<compile_context>
chip_gen: v6e
topology: v6e:2x2x1
jax: 0.10.0
libtpu: 0.0.40
codegen_flags: <defaults>
</compile_context>

<pallas_src>
import functools

import jax
import jax.numpy as jnp
from jax.experimental import pallas as pl
from jax.experimental.pallas import tpu as pltpu

# --- small, consistent hyper-parameters (module implies head_size = n_embd // n_head) ---
N_EMBD = 32     # C
N_HEAD = 4      # H
HEAD_SIZE = N_EMBD // N_HEAD   # 8
SEQ = 8         # T  (<= block_size; causal tril mask built in-kernel)
BATCH = 2       # B
LN_EPS = 1e-5


def _layer_norm(z, gamma, beta):
    mu = jnp.mean(z, axis=-1, keepdims=True)
    var = jnp.mean((z - mu) ** 2, axis=-1, keepdims=True)
    return (z - mu) * jax.lax.rsqrt(var + LN_EPS) * gamma + beta


def block_kernel(x_ref, wqkv_ref, wproj_ref, bproj_ref, g1_ref, be1_ref,
                 w1_ref, b1_ref, w2_ref, b2_ref, g2_ref, be2_ref,
                 o_ref, att_scr, *, n_batch, seq_len, n_head, head_size):
    """One grid step = `n_batch` whole batch elements, M = n_batch*seq_len rows."""
    T, H, hs = seq_len, n_head, head_size
    d_att = H * hs
    mm_dtype = wqkv_ref.dtype            # bf16 when matmul_dtype=bfloat16, else f32

    x = x_ref[...]                       # (M, C) float32

    # --- fused QKV projection: one (M, C) @ (C, 3*H*hs) matmul, f32 accumulation ---
    qkv = jnp.dot(x.astype(mm_dtype), wqkv_ref[...],
                  preferred_element_type=jnp.float32)        # (M, 3*d_att) f32

    # causal additive bias, built once per invocation (finite: no inf arithmetic)
    row = jax.lax.broadcasted_iota(jnp.int32, (T, T), 0)
    col = jax.lax.broadcasted_iota(jnp.int32, (T, T), 1)
    neg_bias = jnp.where(col <= row, 0.0, -1e30).astype(jnp.float32)

    scale = float(hs) ** -0.5
    # small static loops; unrolled at trace time; attention math kept in f32
    for b in range(n_batch):
        r0 = b * T
        for h in range(H):
            q = qkv[r0:r0 + T, h * hs:(h + 1) * hs]                            # (T, hs)
            k = qkv[r0:r0 + T, d_att + h * hs:d_att + (h + 1) * hs]
            v = qkv[r0:r0 + T, 2 * d_att + h * hs:2 * d_att + (h + 1) * hs]
            s = jnp.dot(q, k.T, preferred_element_type=jnp.float32) * scale + neg_bias
            s = s - jnp.max(s, axis=-1, keepdims=True)
            p = jnp.exp(s)
            p = p * pl.reciprocal(jnp.sum(p, axis=-1, keepdims=True), approx=True)
            # gather the "concat over heads" result directly into VMEM scratch
            att_scr[r0:r0 + T, h * hs:(h + 1) * hs] = jnp.dot(
                p, v, preferred_element_type=jnp.float32)                      # (T, hs)

    # --- single output projection over all rows / all heads ---
    sa = jnp.dot(att_scr[...].astype(mm_dtype), wproj_ref[...],
                 preferred_element_type=jnp.float32) + bproj_ref[...]

    # --- residual + LayerNorm 1 (f32) ---
    z1 = _layer_norm(x + sa, g1_ref[...], be1_ref[...])

    # --- feed-forward: Linear(C, 4C) -> ReLU -> Linear(4C, C) ---
    h1 = jnp.maximum(
        jnp.dot(z1.astype(mm_dtype), w1_ref[...],
                preferred_element_type=jnp.float32) + b1_ref[...], 0.0)
    ff = jnp.dot(h1.astype(mm_dtype), w2_ref[...],
                 preferred_element_type=jnp.float32) + b2_ref[...]

    # --- residual + LayerNorm 2 ---
    o_ref[...] = _layer_norm(z1 + ff, g2_ref[...], be2_ref[...])


def transformer_block(x, params, *, num_row_tiles=1, matmul_dtype=jnp.float32):
    """Post-norm transformer block.

    num_row_tiles=1 collapses the grid to a single step (best on v5e/v6e: 1 TC).
    num_row_tiles=2 keeps a "parallel" grid axis over whole batches (v7x: 2 TCs).
    matmul_dtype=jnp.bfloat16 casts matmul operands only (f32 accumulate + f32
    LayerNorm/softmax), as recommended for v6e/v7x's bf16-native MXU.
    """
    B, T, C = x.shape
    H, _, hs = params["wq"].shape
    d_att = H * hs
    C4 = params["w1"].shape[1]

    assert B % num_row_tiles == 0, "num_row_tiles must divide the batch size"
    Bt = B // num_row_tiles            # batch elements per grid step
    M = Bt * T                         # rows per grid step

    # Fuse per-head q/k/v weights into one (C, 3*H*hs) matrix (wrapper-side, free).
    def flat(w):                       # (H, C, hs) -> (C, H*hs)
        return jnp.transpose(w, (1, 0, 2)).reshape(C, d_att)
    wqkv = jnp.concatenate([flat(params["wq"]), flat(params["wk"]),
                            flat(params["wv"])], axis=-1).astype(matmul_dtype)
    wproj = params["wproj"].astype(matmul_dtype)
    w1 = params["w1"].astype(matmul_dtype)
    w2 = params["w2"].astype(matmul_dtype)

    x2d = x.reshape(B * T, C)          # fold batch into the matmul M dimension

    kernel = functools.partial(block_kernel, n_batch=Bt, seq_len=T,
                               n_head=H, head_size=hs)
    full = lambda shape: pl.BlockSpec(shape, lambda i: (0, 0))

    out2d = pl.pallas_call(
        kernel,
        out_shape=jax.ShapeDtypeStruct((B * T, C), jnp.float32),
        grid=(num_row_tiles,),
        in_specs=[
            pl.BlockSpec((M, C), lambda i: (i, 0)),     # x rows for this tile
            full((C, 3 * d_att)),                       # fused wqkv
            full((d_att, C)),                           # wproj
            full((1, C)),                               # bproj
            full((1, C)), full((1, C)),                 # ln1 gamma / beta
            full((C, C4)), full((1, C4)),               # w1, b1
            full((C4, C)), full((1, C)),                # w2, b2
            full((1, C)), full((1, C)),                 # ln2 gamma / beta
        ],
        out_specs=pl.BlockSpec((M, C), lambda i: (i, 0)),
        scratch_shapes=[pltpu.VMEM((M, d_att), jnp.float32)],
        compiler_params=pltpu.CompilerParams(
            dimension_semantics=("parallel",)),
    )(x2d, wqkv, wproj, params["bproj"], params["g1"], params["be1"],
      w1, params["b1"], w2, params["b2"], params["g2"], params["be2"])

    return out2d.reshape(B, T, C)


def make_params(key, C=N_EMBD, H=N_HEAD, hs=HEAD_SIZE):
    ks = jax.random.split(key, 8)
    scale = 0.02
    return {
        "wq": jax.random.normal(ks[0], (H, C, hs), jnp.float32) * scale,
        "wk": jax.random.normal(ks[1], (H, C, hs), jnp.float32) * scale,
        "wv": jax.random.normal(ks[2], (H, C, hs), jnp.float32) * scale,
        "wproj": jax.random.normal(ks[3], (H * hs, C), jnp.float32) * scale,
        "bproj": jax.random.normal(ks[4], (1, C), jnp.float32) * scale,
        "g1": jnp.ones((1, C), jnp.float32),
        "be1": jnp.zeros((1, C), jnp.float32),
        "w1": jax.random.normal(ks[5], (C, 4 * C), jnp.float32) * scale,
        "b1": jax.random.normal(ks[6], (1, 4 * C), jnp.float32) * scale,
        "w2": jax.random.normal(ks[7], (4 * C, C), jnp.float32) * scale,
        "b2": jnp.zeros((1, C), jnp.float32),
        "g2": jnp.ones((1, C), jnp.float32),
        "be2": jnp.zeros((1, C), jnp.float32),
    }


def reference_block(x, p):
    """Pure-JAX reference mirroring the PyTorch forward (eval mode)."""
    B, T, C = x.shape
    H, _, hs = p["wq"].shape
    q = jnp.einsum("btc,hcs->bhts", x, p["wq"])
    k = jnp.einsum("btc,hcs->bhts", x, p["wk"])
    v = jnp.einsum("btc,hcs->bhts", x, p["wv"])
    wei = jnp.einsum("bhts,bhus->bhtu", q, k) * (hs ** -0.5)
    mask = jnp.tril(jnp.ones((T, T), bool))
    wei = jnp.where(mask, wei, -jnp.inf)
    wei = jax.nn.softmax(wei, axis=-1)
    out = jnp.einsum("bhtu,bhus->bhts", wei, v)            # (B,H,T,hs)
    out = jnp.transpose(out, (0, 2, 1, 3)).reshape(B, T, H * hs)
    sa = out @ p["wproj"] + p["bproj"][0]

    def ln(z, g, b):
        mu = z.mean(-1, keepdims=True)
        var = ((z - mu) ** 2).mean(-1, keepdims=True)
        return (z - mu) / jnp.sqrt(var + LN_EPS) * g[0] + b[0]

    z1 = ln(x + sa, p["g1"], p["be1"])
    ff = jnp.maximum(z1 @ p["w1"] + p["b1"][0], 0.0) @ p["w2"] + p["b2"][0]
    return ln(z1 + ff, p["g2"], p["be2"])


if __name__ == "__main__":
    key = jax.random.PRNGKey(0)
    kx, kp = jax.random.split(key)
    x = jax.random.normal(kx, (BATCH, SEQ, N_EMBD), jnp.float32)
    params = make_params(kp)

    ref = reference_block(x, params)

    # f32 path, grid collapsed to a single step (the v5e/v6e configuration).
    out = jax.block_until_ready(transformer_block(x, params))
    assert out.shape == (BATCH, SEQ, N_EMBD)
    assert jnp.allclose(out, ref, atol=1e-3, rtol=1e-3), "f32 kernel mismatch vs reference"

    # bf16 matmul operands + 2 parallel row tiles (the v7x configuration).
    out_bf16 = jax.block_until_ready(
        transformer_block(x, params, num_row_tiles=2, matmul_dtype=jnp.bfloat16))
    assert out_bf16.shape == (BATCH, SEQ, N_EMBD)
    assert jnp.allclose(out_bf16, ref, atol=2e-2, rtol=2e-2), "bf16 kernel mismatch vs reference"

    print("KERNEL_OK")
</pallas_src>

<mosaic_0001>
module attributes {stable_mosaic.version = 11 : i64} {
  func.func @block_kernel(%arg0: i32, %arg1: memref<16x32xf32, #tpu.memory_space<vmem>>, %arg2: memref<32x96xf32, #tpu.memory_space<vmem>>, %arg3: memref<32x32xf32, #tpu.memory_space<vmem>>, %arg4: memref<1x32xf32, #tpu.memory_space<vmem>>, %arg5: memref<1x32xf32, #tpu.memory_space<vmem>>, %arg6: memref<1x32xf32, #tpu.memory_space<vmem>>, %arg7: memref<32x128xf32, #tpu.memory_space<vmem>>, %arg8: memref<1x128xf32, #tpu.memory_space<vmem>>, %arg9: memref<128x32xf32, #tpu.memory_space<vmem>>, %arg10: memref<1x32xf32, #tpu.memory_space<vmem>>, %arg11: memref<1x32xf32, #tpu.memory_space<vmem>>, %arg12: memref<1x32xf32, #tpu.memory_space<vmem>>, %arg13: memref<16x32xf32, #tpu.memory_space<vmem>>, %arg14: memref<16x32xf32, #tpu.memory_space<vmem>>) attributes {dimension_semantics = [#tpu.dimension_semantics<parallel>], iteration_bounds = array<i64: 1>, scalar_prefetch = 0 : i64, scratch_operands = 1 : i64, tpu.core_type = #tpu.core_type<tc>, window_params = [{transform_indices = @transform_0, window_bounds = array<i64: 16, 32>}, {pipeline_mode = #tpu.pipeline_mode<synchronous>, transform_indices = @transform_1, window_bounds = array<i64: 32, 96>}, {pipeline_mode = #tpu.pipeline_mode<synchronous>, transform_indices = @transform_2, window_bounds = array<i64: 32, 32>}, {pipeline_mode = #tpu.pipeline_mode<synchronous>, transform_indices = @transform_3, window_bounds = array<i64: 1, 32>}, {pipeline_mode = #tpu.pipeline_mode<synchronous>, transform_indices = @transform_4, window_bounds = array<i64: 1, 32>}, {pipeline_mode = #tpu.pipeline_mode<synchronous>, transform_indices = @transform_5, window_bounds = array<i64: 1, 32>}, {pipeline_mode = #tpu.pipeline_mode<synchronous>, transform_indices = @transform_6, window_bounds = array<i64: 32, 128>}, {pipeline_mode = #tpu.pipeline_mode<synchronous>, transform_indices = @transform_7, window_bounds = array<i64: 1, 128>}, {pipeline_mode = #tpu.pipeline_mode<synchronous>, transform_indices = @transform_8, window_bounds = array<i64: 128, 32>}, {pipeline_mode = #tpu.pipeline_mode<synchronous>, transform_indices = @transform_9, window_bounds = array<i64: 1, 32>}, {pipeline_mode = #tpu.pipeline_mode<synchronous>, transform_indices = @transform_10, window_bounds = array<i64: 1, 32>}, {pipeline_mode = #tpu.pipeline_mode<synchronous>, transform_indices = @transform_11, window_bounds = array<i64: 1, 32>}, {transform_indices = @transform_12, window_bounds = array<i64: 16, 32>}]} {
    %c0 = arith.constant 0 : index
    %c0_0 = arith.constant 0 : index
    %0 = vector.load %arg1[%c0, %c0_0] : memref<16x32xf32, #tpu.memory_space<vmem>>, vector<16x32xf32>
    %c0_1 = arith.constant 0 : index
    %c0_2 = arith.constant 0 : index
    %1 = vector.load %arg2[%c0_1, %c0_2] : memref<32x96xf32, #tpu.memory_space<vmem>>, vector<32x96xf32>
    %cst = arith.constant dense<0.000000e+00> : vector<16x96xf32>
    %2 = tpu.matmul %0, %1, %cst {dimension_numbers = #tpu.dot_dimension_numbers<[1], [0], [0], [1], [0, 0, 1, 1], [], []>} : vector<16x32xf32>, vector<32x96xf32>, vector<16x96xf32> -> vector<16x96xf32>
    %3 = tpu.iota {dimensions = array<i32: 0>} : vector<8x8xi32>
    %4 = tpu.iota {dimensions = array<i32: 1>} : vector<8x8xi32>
    %5 = arith.cmpi sle, %4, %3 : vector<8x8xi32>
    %cst_3 = arith.constant 0.000000e+00 : f32
    %cst_4 = arith.constant -1.000000e+30 : f32
    %6 = vector.broadcast %cst_3 : f32 to vector<8x8xf32>
    %7 = vector.broadcast %cst_4 : f32 to vector<8x8xf32>
    %8 = arith.select %5, %6, %7 : vector<8x8xi1>, vector<8x8xf32>
    %9 = vector.extract_strided_slice %2 {offsets = [0, 0], sizes = [8, 8], strides = [1, 1]} : vector<16x96xf32> to vector<8x8xf32>
    %10 = vector.extract_strided_slice %2 {offsets = [0, 32], sizes = [8, 8], strides = [1, 1]} : vector<16x96xf32> to vector<8x8xf32>
    %11 = vector.extract_strided_slice %2 {offsets = [0, 64], sizes = [8, 8], strides = [1, 1]} : vector<16x96xf32> to vector<8x8xf32>
    %12 = tpu.transpose %10, [1, 0] : vector<8x8xf32> -> vector<8x8xf32>
    %cst_5 = arith.constant dense<0.000000e+00> : vector<8x8xf32>
    %13 = tpu.matmul %9, %12, %cst_5 {dimension_numbers = #tpu.dot_dimension_numbers<[1], [0], [0], [1], [0, 0, 1, 1], [], []>} : vector<8x8xf32>, vector<8x8xf32>, vector<8x8xf32> -> vector<8x8xf32>
    %cst_6 = arith.constant 0.353553385 : f32
    %14 = vector.broadcast %cst_6 : f32 to vector<8x8xf32>
    %15 = arith.mulf %13, %14 : vector<8x8xf32>
    %16 = arith.addf %15, %8 : vector<8x8xf32>
    %cst_7 = arith.constant dense<0xFF800000> : vector<8xf32>
    %17 = vector.multi_reduction <maximumf>, %16, %cst_7 [1] : vector<8x8xf32> to vector<8xf32>
    %18 = vector.shape_cast %17 : vector<8xf32> to vector<8x1xf32>
    %19 = vector.broadcast %18 : vector<8x1xf32> to vector<8x8xf32>
    %20 = arith.subf %16, %19 : vector<8x8xf32>
    %21 = math.exp %20 : vector<8x8xf32>
    %cst_8 = arith.constant dense<0.000000e+00> : vector<8xf32>
    %22 = vector.multi_reduction <add>, %21, %cst_8 [1] : vector<8x8xf32> to vector<8xf32>
    %23 = vector.shape_cast %22 : vector<8xf32> to vector<8x1xf32>
    %24 = tpu.reciprocal %23 {approx = true} : vector<8x1xf32> -> vector<8x1xf32>
    %25 = vector.broadcast %24 : vector<8x1xf32> to vector<8x8xf32>
    %26 = arith.mulf %21, %25 : vector<8x8xf32>
    %cst_9 = arith.constant dense<0.000000e+00> : vector<8x8xf32>
    %27 = tpu.matmul %26, %11, %cst_9 {dimension_numbers = #tpu.dot_dimension_numbers<[1], [0], [0], [1], [0, 0, 1, 1], [], []>} : vector<8x8xf32>, vector<8x8xf32>, vector<8x8xf32> -> vector<8x8xf32>
    %c0_10 = arith.constant 0 : index
    %c0_11 = arith.constant 0 : index
    %28 = vector.load %arg14[%c0_10, %c0_11] : memref<16x32xf32, #tpu.memory_space<vmem>>, vector<8x8xf32>
    tpu.vector_store %arg14[%c0_10, %c0_11], %27 {strides = array<i32>} : memref<16x32xf32, #tpu.memory_space<vmem>>, vector<8x8xf32>,
    %29 = vector.extract_strided_slice %2 {offsets = [0, 8], sizes = [8, 8], strides = [1, 1]} : vector<16x96xf32> to vector<8x8xf32>
    %30 = vector.extract_strided_slice %2 {offsets = [0, 40], sizes = [8, 8], strides = [1, 1]} : vector<16x96xf32> to vector<8x8xf32>
    %31 = vector.extract_strided_slice %2 {offsets = [0, 72], sizes = [8, 8], strides = [1, 1]} : vector<16x96xf32> to vector<8x8xf32>
    %32 = tpu.transpose %30, [1, 0] : vector<8x8xf32> -> vector<8x8xf32>
    %cst_12 = arith.constant dense<0.000000e+00> : vector<8x8xf32>
    %33 = tpu.matmul %29, %32, %cst_12 {dimension_numbers = #tpu.dot_dimension_numbers<[1], [0], [0], [1], [0, 0, 1, 1], [], []>} : vector<8x8xf32>, vector<8x8xf32>, vector<8x8xf32> -> vector<8x8xf32>
    %cst_13 = arith.constant 0.353553385 : f32
    %34 = vector.broadcast %cst_13 : f32 to vector<8x8xf32>
    %35 = arith.mulf %33, %34 : vector<8x8xf32>
    %36 = arith.addf %35, %8 : vector<8x8xf32>
    %cst_14 = arith.constant dense<0xFF800000> : vector<8xf32>
    %37 = vector.multi_reduction <maximumf>, %36, %cst_14 [1] : vector<8x8xf32> to vector<8xf32>
    %38 = vector.shape_cast %37 : vector<8xf32> to vector<8x1xf32>
    %39 = vector.broadcast %38 : vector<8x1xf32> to vector<8x8xf32>
    %40 = arith.subf %36, %39 : vector<8x8xf32>
    %41 = math.exp %40 : vector<8x8xf32>
    %cst_15 = arith.constant dense<0.000000e+00> : vector<8xf32>
    %42 = vector.multi_reduction <add>, %41, %cst_15 [1] : vector<8x8xf32> to vector<8xf32>
    %43 = vector.shape_cast %42 : vector<8xf32> to vector<8x1xf32>
    %44 = tpu.reciprocal %43 {approx = true} : vector<8x1xf32> -> vector<8x1xf32>
    %45 = vector.broadcast %44 : vector<8x1xf32> to vector<8x8xf32>
    %46 = arith.mulf %41, %45 : vector<8x8xf32>
    %cst_16 = arith.constant dense<0.000000e+00> : vector<8x8xf32>
    %47 = tpu.matmul %46, %31, %cst_16 {dimension_numbers = #tpu.dot_dimension_numbers<[1], [0], [0], [1], [0, 0, 1, 1], [], []>} : vector<8x8xf32>, vector<8x8xf32>, vector<8x8xf32> -> vector<8x8xf32>
    %c0_17 = arith.constant 0 : index
    %c8 = arith.constant 8 : index
    %48 = vector.load %arg14[%c0_17, %c8] : memref<16x32xf32, #tpu.memory_space<vmem>>, vector<8x8xf32>
    tpu.vector_store %arg14[%c0_17, %c8], %47 {strides = array<i32>} : memref<16x32xf32, #tpu.memory_space<vmem>>, vector<8x8xf32>,
    %49 = vector.extract_strided_slice %2 {offsets = [0, 16], sizes = [8, 8], strides = [1, 1]} : vector<16x96xf32> to vector<8x8xf32>
    %50 = vector.extract_strided_slice %2 {offsets = [0, 48], sizes = [8, 8], strides = [1, 1]} : vector<16x96xf32> to vector<8x8xf32>
    %51 = vector.extract_strided_slice %2 {offsets = [0, 80], sizes = [8, 8], strides = [1, 1]} : vector<16x96xf32> to vector<8x8xf32>
    %52 = tpu.transpose %50, [1, 0] : vector<8x8xf32> -> vector<8x8xf32>
    %cst_18 = arith.constant dense<0.000000e+00> : vector<8x8xf32>
    %53 = tpu.matmul %49, %52, %cst_18 {dimension_numbers = #tpu.dot_dimension_numbers<[1], [0], [0], [1], [0, 0, 1, 1], [], []>} : vector<8x8xf32>, vector<8x8xf32>, vector<8x8xf32> -> vector<8x8xf32>
    %cst_19 = arith.constant 0.353553385 : f32
    %54 = vector.broadcast %cst_19 : f32 to vector<8x8xf32>
    %55 = arith.mulf %53, %54 : vector<8x8xf32>
    %56 = arith.addf %55, %8 : vector<8x8xf32>
    %cst_20 = arith.constant dense<0xFF800000> : vector<8xf32>
    %57 = vector.multi_reduction <maximumf>, %56, %cst_20 [1] : vector<8x8xf32> to vector<8xf32>
    %58 = vector.shape_cast %57 : vector<8xf32> to vector<8x1xf32>
    %59 = vector.broadcast %58 : vector<8x1xf32> to vector<8x8xf32>
    %60 = arith.subf %56, %59 : vector<8x8xf32>
    %61 = math.exp %60 : vector<8x8xf32>
    %cst_21 = arith.constant dense<0.000000e+00> : vector<8xf32>
    %62 = vector.multi_reduction <add>, %61, %cst_21 [1] : vector<8x8xf32> to vector<8xf32>
    %63 = vector.shape_cast %62 : vector<8xf32> to vector<8x1xf32>
    %64 = tpu.reciprocal %63 {approx = true} : vector<8x1xf32> -> vector<8x1xf32>
    %65 = vector.broadcast %64 : vector<8x1xf32> to vector<8x8xf32>
    %66 = arith.mulf %61, %65 : vector<8x8xf32>
    %cst_22 = arith.constant dense<0.000000e+00> : vector<8x8xf32>
    %67 = tpu.matmul %66, %51, %cst_22 {dimension_numbers = #tpu.dot_dimension_numbers<[1], [0], [0], [1], [0, 0, 1, 1], [], []>} : vector<8x8xf32>, vector<8x8xf32>, vector<8x8xf32> -> vector<8x8xf32>
    %c0_23 = arith.constant 0 : index
    %c16 = arith.constant 16 : index
    %68 = vector.load %arg14[%c0_23, %c16] : memref<16x32xf32, #tpu.memory_space<vmem>>, vector<8x8xf32>
    tpu.vector_store %arg14[%c0_23, %c16], %67 {strides = array<i32>} : memref<16x32xf32, #tpu.memory_space<vmem>>, vector<8x8xf32>,
    %69 = vector.extract_strided_slice %2 {offsets = [0, 24], sizes = [8, 8], strides = [1, 1]} : vector<16x96xf32> to vector<8x8xf32>
    %70 = vector.extract_strided_slice %2 {offsets = [0, 56], sizes = [8, 8], strides = [1, 1]} : vector<16x96xf32> to vector<8x8xf32>
    %71 = vector.extract_strided_slice %2 {offsets = [0, 88], sizes = [8, 8], strides = [1, 1]} : vector<16x96xf32> to vector<8x8xf32>
    %72 = tpu.transpose %70, [1, 0] : vector<8x8xf32> -> vector<8x8xf32>
    %cst_24 = arith.constant dense<0.000000e+00> : vector<8x8xf32>
    %73 = tpu.matmul %69, %72, %cst_24 {dimension_numbers = #tpu.dot_dimension_numbers<[1], [0], [0], [1], [0, 0, 1, 1], [], []>} : vector<8x8xf32>, vector<8x8xf32>, vector<8x8xf32> -> vector<8x8xf32>
    %cst_25 = arith.constant 0.353553385 : f32
    %74 = vector.broadcast %cst_25 : f32 to vector<8x8xf32>
    %75 = arith.mulf %73, %74 : vector<8x8xf32>
    %76 = arith.addf %75, %8 : vector<8x8xf32>
    %cst_26 = arith.constant dense<0xFF800000> : vector<8xf32>
    %77 = vector.multi_reduction <maximumf>, %76, %cst_26 [1] : vector<8x8xf32> to vector<8xf32>
    %78 = vector.shape_cast %77 : vector<8xf32> to vector<8x1xf32>
    %79 = vector.broadcast %78 : vector<8x1xf32> to vector<8x8xf32>
    %80 = arith.subf %76, %79 : vector<8x8xf32>
    %81 = math.exp %80 : vector<8x8xf32>
    %cst_27 = arith.constant dense<0.000000e+00> : vector<8xf32>
    %82 = vector.multi_reduction <add>, %81, %cst_27 [1] : vector<8x8xf32> to vector<8xf32>
    %83 = vector.shape_cast %82 : vector<8xf32> to vector<8x1xf32>
    %84 = tpu.reciprocal %83 {approx = true} : vector<8x1xf32> -> vector<8x1xf32>
    %85 = vector.broadcast %84 : vector<8x1xf32> to vector<8x8xf32>
    %86 = arith.mulf %81, %85 : vector<8x8xf32>
    %cst_28 = arith.constant dense<0.000000e+00> : vector<8x8xf32>
    %87 = tpu.matmul %86, %71, %cst_28 {dimension_numbers = #tpu.dot_dimension_numbers<[1], [0], [0], [1], [0, 0, 1, 1], [], []>} : vector<8x8xf32>, vector<8x8xf32>, vector<8x8xf32> -> vector<8x8xf32>
    %c0_29 = arith.constant 0 : index
    %c24 = arith.constant 24 : index
    %88 = vector.load %arg14[%c0_29, %c24] : memref<16x32xf32, #tpu.memory_space<vmem>>, vector<8x8xf32>
    tpu.vector_store %arg14[%c0_29, %c24], %87 {strides = array<i32>} : memref<16x32xf32, #tpu.memory_space<vmem>>, vector<8x8xf32>,
    %89 = vector.extract_strided_slice %2 {offsets = [8, 0], sizes = [8, 8], strides = [1, 1]} : vector<16x96xf32> to vector<8x8xf32>
    %90 = vector.extract_strided_slice %2 {offsets = [8, 32], sizes = [8, 8], strides = [1, 1]} : vector<16x96xf32> to vector<8x8xf32>
    %91 = vector.extract_strided_slice %2 {offsets = [8, 64], sizes = [8, 8], strides = [1, 1]} : vector<16x96xf32> to vector<8x8xf32>
    %92 = tpu.transpose %90, [1, 0] : vector<8x8xf32> -> vector<8x8xf32>
    %cst_30 = arith.constant dense<0.000000e+00> : vector<8x8xf32>
    %93 = tpu.matmul %89, %92, %cst_30 {dimension_numbers = #tpu.dot_dimension_numbers<[1], [0], [0], [1], [0, 0, 1, 1], [], []>} : vector<8x8xf32>, vector<8x8xf32>, vector<8x8xf32> -> vector<8x8xf32>
    %cst_31 = arith.constant 0.353553385 : f32
    %94 = vector.broadcast %cst_31 : f32 to vector<8x8xf32>
    %95 = arith.mulf %93, %94 : vector<8x8xf32>
    %96 = arith.addf %95, %8 : vector<8x8xf32>
    %cst_32 = arith.constant dense<0xFF800000> : vector<8xf32>
    %97 = vector.multi_reduction <maximumf>, %96, %cst_32 [1] : vector<8x8xf32> to vector<8xf32>
    %98 = vector.shape_cast %97 : vector<8xf32> to vector<8x1xf32>
    %99 = vector.broadcast %98 : vector<8x1xf32> to vector<8x8xf32>
    %100 = arith.subf %96, %99 : vector<8x8xf32>
    %101 = math.exp %100 : vector<8x8xf32>
    %cst_33 = arith.constant dense<0.000000e+00> : vector<8xf32>
    %102 = vector.multi_reduction <add>, %101, %cst_33 [1] : vector<8x8xf32> to vector<8xf32>
    %103 = vector.shape_cast %102 : vector<8xf32> to vector<8x1xf32>
    %104 = tpu.reciprocal %103 {approx = true} : vector<8x1xf32> -> vector<8x1xf32>
    %105 = vector.broadcast %104 : vector<8x1xf32> to vector<8x8xf32>
    %106 = arith.mulf %101, %105 : vector<8x8xf32>
    %cst_34 = arith.constant dense<0.000000e+00> : vector<8x8xf32>
    %107 = tpu.matmul %106, %91, %cst_34 {dimension_numbers = #tpu.dot_dimension_numbers<[1], [0], [0], [1], [0, 0, 1, 1], [], []>} : vector<8x8xf32>, vector<8x8xf32>, vector<8x8xf32> -> vector<8x8xf32>
    %c8_35 = arith.constant 8 : index
    %c0_36 = arith.constant 0 : index
    %108 = vector.load %arg14[%c8_35, %c0_36] : memref<16x32xf32, #tpu.memory_space<vmem>>, vector<8x8xf32>
    tpu.vector_store %arg14[%c8_35, %c0_36], %107 {strides = array<i32>} : memref<16x32xf32, #tpu.memory_space<vmem>>, vector<8x8xf32>,
    %109 = vector.extract_strided_slice %2 {offsets = [8, 8], sizes = [8, 8], strides = [1, 1]} : vector<16x96xf32> to vector<8x8xf32>
    %110 = vector.extract_strided_slice %2 {offsets = [8, 40], sizes = [8, 8], strides = [1, 1]} : vector<16x96xf32> to vector<8x8xf32>
    %111 = vector.extract_strided_slice %2 {offsets = [8, 72], sizes = [8, 8], strides = [1, 1]} : vector<16x96xf32> to vector<8x8xf32>
    %112 = tpu.transpose %110, [1, 0] : vector<8x8xf32> -> vector<8x8xf32>
    %cst_37 = arith.constant dense<0.000000e+00> : vector<8x8xf32>
    %113 = tpu.matmul %109, %112, %cst_37 {dimension_numbers = #tpu.dot_dimension_numbers<[1], [0], [0], [1], [0, 0, 1, 1], [], []>} : vector<8x8xf32>, vector<8x8xf32>, vector<8x8xf32> -> vector<8x8xf32>
    %cst_38 = arith.constant 0.353553385 : f32
    %114 = vector.broadcast %cst_38 : f32 to vector<8x8xf32>
    %115 = arith.mulf %113, %114 : vector<8x8xf32>
    %116 = arith.addf %115, %8 : vector<8x8xf32>
    %cst_39 = arith.constant dense<0xFF800000> : vector<8xf32>
    %117 = vector.multi_reduction <maximumf>, %116, %cst_39 [1] : vector<8x8xf32> to vector<8xf32>
    %118 = vector.shape_cast %117 : vector<8xf32> to vector<8x1xf32>
    %119 = vector.broadcast %118 : vector<8x1xf32> to vector<8x8xf32>
    %120 = arith.subf %116, %119 : vector<8x8xf32>
    %121 = math.exp %120 : vector<8x8xf32>
    %cst_40 = arith.constant dense<0.000000e+00> : vector<8xf32>
    %122 = vector.multi_reduction <add>, %121, %cst_40 [1] : vector<8x8xf32> to vector<8xf32>
    %123 = vector.shape_cast %122 : vector<8xf32> to vector<8x1xf32>
    %124 = tpu.reciprocal %123 {approx = true} : vector<8x1xf32> -> vector<8x1xf32>
    %125 = vector.broadcast %124 : vector<8x1xf32> to vector<8x8xf32>
    %126 = arith.mulf %121, %125 : vector<8x8xf32>
    %cst_41 = arith.constant dense<0.000000e+00> : vector<8x8xf32>
    %127 = tpu.matmul %126, %111, %cst_41 {dimension_numbers = #tpu.dot_dimension_numbers<[1], [0], [0], [1], [0, 0, 1, 1], [], []>} : vector<8x8xf32>, vector<8x8xf32>, vector<8x8xf32> -> vector<8x8xf32>
    %c8_42 = arith.constant 8 : index
    %c8_43 = arith.constant 8 : index
    %128 = vector.load %arg14[%c8_42, %c8_43] : memref<16x32xf32, #tpu.memory_space<vmem>>, vector<8x8xf32>
    tpu.vector_store %arg14[%c8_42, %c8_43], %127 {strides = array<i32>} : memref<16x32xf32, #tpu.memory_space<vmem>>, vector<8x8xf32>,
    %129 = vector.extract_strided_slice %2 {offsets = [8, 16], sizes = [8, 8], strides = [1, 1]} : vector<16x96xf32> to vector<8x8xf32>
    %130 = vector.extract_strided_slice %2 {offsets = [8, 48], sizes = [8, 8], strides = [1, 1]} : vector<16x96xf32> to vector<8x8xf32>
    %131 = vector.extract_strided_slice %2 {offsets = [8, 80], sizes = [8, 8], strides = [1, 1]} : vector<16x96xf32> to vector<8x8xf32>
    %132 = tpu.transpose %130, [1, 0] : vector<8x8xf32> -> vector<8x8xf32>
    %cst_44 = arith.constant dense<0.000000e+00> : vector<8x8xf32>
    %133 = tpu.matmul %129, %132, %cst_44 {dimension_numbers = #tpu.dot_dimension_numbers<[1], [0], [0], [1], [0, 0, 1, 1], [], []>} : vector<8x8xf32>, vector<8x8xf32>, vector<8x8xf32> -> vector<8x8xf32>
    %cst_45 = arith.constant 0.353553385 : f32
    %134 = vector.broadcast %cst_45 : f32 to vector<8x8xf32>
    %135 = arith.mulf %133, %134 : vector<8x8xf32>
    %136 = arith.addf %135, %8 : vector<8x8xf32>
    %cst_46 = arith.constant dense<0xFF800000> : vector<8xf32>
    %137 = vector.multi_reduction <maximumf>, %136, %cst_46 [1] : vector<8x8xf32> to vector<8xf32>
    %138 = vector.shape_cast %137 : vector<8xf32> to vector<8x1xf32>
    %139 = vector.broadcast %138 : vector<8x1xf32> to vector<8x8xf32>
    %140 = arith.subf %136, %139 : vector<8x8xf32>
    %141 = math.exp %140 : vector<8x8xf32>
    %cst_47 = arith.constant dense<0.000000e+00> : vector<8xf32>
    %142 = vector.multi_reduction <add>, %141, %cst_47 [1] : vector<8x8xf32> to vector<8xf32>
    %143 = vector.shape_cast %142 : vector<8xf32> to vector<8x1xf32>
    %144 = tpu.reciprocal %143 {approx = true} : vector<8x1xf32> -> vector<8x1xf32>
    %145 = vector.broadcast %144 : vector<8x1xf32> to vector<8x8xf32>
    %146 = arith.mulf %141, %145 : vector<8x8xf32>
    %cst_48 = arith.constant dense<0.000000e+00> : vector<8x8xf32>
    %147 = tpu.matmul %146, %131, %cst_48 {dimension_numbers = #tpu.dot_dimension_numbers<[1], [0], [0], [1], [0, 0, 1, 1], [], []>} : vector<8x8xf32>, vector<8x8xf32>, vector<8x8xf32> -> vector<8x8xf32>
    %c8_49 = arith.constant 8 : index
    %c16_50 = arith.constant 16 : index
    %148 = vector.load %arg14[%c8_49, %c16_50] : memref<16x32xf32, #tpu.memory_space<vmem>>, vector<8x8xf32>
    tpu.vector_store %arg14[%c8_49, %c16_50], %147 {strides = array<i32>} : memref<16x32xf32, #tpu.memory_space<vmem>>, vector<8x8xf32>,
    %149 = vector.extract_strided_slice %2 {offsets = [8, 24], sizes = [8, 8], strides = [1, 1]} : vector<16x96xf32> to vector<8x8xf32>
    %150 = vector.extract_strided_slice %2 {offsets = [8, 56], sizes = [8, 8], strides = [1, 1]} : vector<16x96xf32> to vector<8x8xf32>
    %151 = vector.extract_strided_slice %2 {offsets = [8, 88], sizes = [8, 8], strides = [1, 1]} : vector<16x96xf32> to vector<8x8xf32>
    %152 = tpu.transpose %150, [1, 0] : vector<8x8xf32> -> vector<8x8xf32>
    %cst_51 = arith.constant dense<0.000000e+00> : vector<8x8xf32>
    %153 = tpu.matmul %149, %152, %cst_51 {dimension_numbers = #tpu.dot_dimension_numbers<[1], [0], [0], [1], [0, 0, 1, 1], [], []>} : vector<8x8xf32>, vector<8x8xf32>, vector<8x8xf32> -> vector<8x8xf32>
    %cst_52 = arith.constant 0.353553385 : f32
    %154 = vector.broadcast %cst_52 : f32 to vector<8x8xf32>
    %155 = arith.mulf %153, %154 : vector<8x8xf32>
    %156 = arith.addf %155, %8 : vector<8x8xf32>
    %cst_53 = arith.constant dense<0xFF800000> : vector<8xf32>
    %157 = vector.multi_reduction <maximumf>, %156, %cst_53 [1] : vector<8x8xf32> to vector<8xf32>
    %158 = vector.shape_cast %157 : vector<8xf32> to vector<8x1xf32>
    %159 = vector.broadcast %158 : vector<8x1xf32> to vector<8x8xf32>
    %160 = arith.subf %156, %159 : vector<8x8xf32>
    %161 = math.exp %160 : vector<8x8xf32>
    %cst_54 = arith.constant dense<0.000000e+00> : vector<8xf32>
    %162 = vector.multi_reduction <add>, %161, %cst_54 [1] : vector<8x8xf32> to vector<8xf32>
    %163 = vector.shape_cast %162 : vector<8xf32> to vector<8x1xf32>
    %164 = tpu.reciprocal %163 {approx = true} : vector<8x1xf32> -> vector<8x1xf32>
    %165 = vector.broadcast %164 : vector<8x1xf32> to vector<8x8xf32>
    %166 = arith.mulf %161, %165 : vector<8x8xf32>
    %cst_55 = arith.constant dense<0.000000e+00> : vector<8x8xf32>
    %167 = tpu.matmul %166, %151, %cst_55 {dimension_numbers = #tpu.dot_dimension_numbers<[1], [0], [0], [1], [0, 0, 1, 1], [], []>} : vector<8x8xf32>, vector<8x8xf32>, vector<8x8xf32> -> vector<8x8xf32>
    %c8_56 = arith.constant 8 : index
    %c24_57 = arith.constant 24 : index
    %168 = vector.load %arg14[%c8_56, %c24_57] : memref<16x32xf32, #tpu.memory_space<vmem>>, vector<8x8xf32>
    tpu.vector_store %arg14[%c8_56, %c24_57], %167 {strides = array<i32>} : memref<16x32xf32, #tpu.memory_space<vmem>>, vector<8x8xf32>,
    %c0_58 = arith.constant 0 : index
    %c0_59 = arith.constant 0 : index
    %169 = vector.load %arg14[%c0_58, %c0_59] : memref<16x32xf32, #tpu.memory_space<vmem>>, vector<16x32xf32>
    %c0_60 = arith.constant 0 : index
    %c0_61 = arith.constant 0 : index
    %170 = vector.load %arg3[%c0_60, %c0_61] : memref<32x32xf32, #tpu.memory_space<vmem>>, vector<32x32xf32>
    %cst_62 = arith.constant dense<0.000000e+00> : vector<16x32xf32>
    %171 = tpu.matmul %169, %170, %cst_62 {dimension_numbers = #tpu.dot_dimension_numbers<[1], [0], [0], [1], [0, 0, 1, 1], [], []>} : vector<16x32xf32>, vector<32x32xf32>, vector<16x32xf32> -> vector<16x32xf32>
    %c0_63 = arith.constant 0 : index
    %c0_64 = arith.constant 0 : index
    %172 = vector.load %arg4[%c0_63, %c0_64] : memref<1x32xf32, #tpu.memory_space<vmem>>, vector<1x32xf32>
    %173 = vector.broadcast %172 : vector<1x32xf32> to vector<16x32xf32>
    %174 = arith.addf %171, %173 : vector<16x32xf32>
    %175 = arith.addf %0, %174 : vector<16x32xf32>
    %c0_65 = arith.constant 0 : index
    %c0_66 = arith.constant 0 : index
    %176 = vector.load %arg5[%c0_65, %c0_66] : memref<1x32xf32, #tpu.memory_space<vmem>>, vector<1x32xf32>
    %c0_67 = arith.constant 0 : index
    %c0_68 = arith.constant 0 : index
    %177 = vector.load %arg6[%c0_67, %c0_68] : memref<1x32xf32, #tpu.memory_space<vmem>>, vector<1x32xf32>
    %cst_69 = arith.constant dense<0.000000e+00> : vector<16xf32>
    %178 = vector.multi_reduction <add>, %175, %cst_69 [1] : vector<16x32xf32> to vector<16xf32>
    %179 = vector.shape_cast %178 : vector<16xf32> to vector<16x1xf32>
    %cst_70 = arith.constant 3.200000e+01 : f32
    %180 = vector.broadcast %cst_70 : f32 to vector<16x1xf32>
    %181 = arith.divf %179, %180 : vector<16x1xf32>
    %182 = vector.broadcast %181 : vector<16x1xf32> to vector<16x32xf32>
    %183 = arith.subf %175, %182 : vector<16x32xf32>
    %184 = arith.mulf %183, %183 : vector<16x32xf32>
    %cst_71 = arith.constant dense<0.000000e+00> : vector<16xf32>
    %185 = vector.multi_reduction <add>, %184, %cst_71 [1] : vector<16x32xf32> to vector<16xf32>
    %186 = vector.shape_cast %185 : vector<16xf32> to vector<16x1xf32>
    %cst_72 = arith.constant 3.200000e+01 : f32
    %187 = vector.broadcast %cst_72 : f32 to vector<16x1xf32>
    %188 = arith.divf %186, %187 : vector<16x1xf32>
    %189 = vector.broadcast %181 : vector<16x1xf32> to vector<16x32xf32>
    %190 = arith.subf %175, %189 : vector<16x32xf32>
    %cst_73 = arith.constant 9.99999974E-6 : f32
    %191 = vector.broadcast %cst_73 : f32 to vector<16x1xf32>
    %192 = arith.addf %188, %191 : vector<16x1xf32>
    %193 = math.rsqrt %192 : vector<16x1xf32>
    %194 = vector.broadcast %193 : vector<16x1xf32> to vector<16x32xf32>
    %195 = arith.mulf %190, %194 : vector<16x32xf32>
    %196 = vector.broadcast %176 : vector<1x32xf32> to vector<16x32xf32>
    %197 = arith.mulf %195, %196 : vector<16x32xf32>
    %198 = vector.broadcast %177 : vector<1x32xf32> to vector<16x32xf32>
    %199 = arith.addf %197, %198 : vector<16x32xf32>
    %c0_74 = arith.constant 0 : index
    %c0_75 = arith.constant 0 : index
    %200 = vector.load %arg7[%c0_74, %c0_75] : memref<32x128xf32, #tpu.memory_space<vmem>>, vector<32x128xf32>
    %cst_76 = arith.constant dense<0.000000e+00> : vector<16x128xf32>
    %201 = tpu.matmul %199, %200, %cst_76 {dimension_numbers = #tpu.dot_dimension_numbers<[1], [0], [0], [1], [0, 0, 1, 1], [], []>} : vector<16x32xf32>, vector<32x128xf32>, vector<16x128xf32> -> vector<16x128xf32>
    %c0_77 = arith.constant 0 : index
    %c0_78 = arith.constant 0 : index
    %202 = vector.load %arg8[%c0_77, %c0_78] : memref<1x128xf32, #tpu.memory_space<vmem>>, vector<1x128xf32>
    %203 = vector.broadcast %202 : vector<1x128xf32> to vector<16x128xf32>
    %204 = arith.addf %201, %203 : vector<16x128xf32>
    %cst_79 = arith.constant 0.000000e+00 : f32
    %205 = vector.broadcast %cst_79 : f32 to vector<16x128xf32>
    %206 = arith.maximumf %204, %205 : vector<16x128xf32>
    %c0_80 = arith.constant 0 : index
    %c0_81 = arith.constant 0 : index
    %207 = vector.load %arg9[%c0_80, %c0_81] : memref<128x32xf32, #tpu.memory_space<vmem>>, vector<128x32xf32>
    %cst_82 = arith.constant dense<0.000000e+00> : vector<16x32xf32>
    %208 = tpu.matmul %206, %207, %cst_82 {dimension_numbers = #tpu.dot_dimension_numbers<[1], [0], [0], [1], [0, 0, 1, 1], [], []>} : vector<16x128xf32>, vector<128x32xf32>, vector<16x32xf32> -> vector<16x32xf32>
    %c0_83 = arith.constant 0 : index
    %c0_84 = arith.constant 0 : index
    %209 = vector.load %arg10[%c0_83, %c0_84] : memref<1x32xf32, #tpu.memory_space<vmem>>, vector<1x32xf32>
    %210 = vector.broadcast %209 : vector<1x32xf32> to vector<16x32xf32>
    %211 = arith.addf %208, %210 : vector<16x32xf32>
    %212 = arith.addf %199, %211 : vector<16x32xf32>
    %c0_85 = arith.constant 0 : index
    %c0_86 = arith.constant 0 : index
    %213 = vector.load %arg11[%c0_85, %c0_86] : memref<1x32xf32, #tpu.memory_space<vmem>>, vector<1x32xf32>
    %c0_87 = arith.constant 0 : index
    %c0_88 = arith.constant 0 : index
    %214 = vector.load %arg12[%c0_87, %c0_88] : memref<1x32xf32, #tpu.memory_space<vmem>>, vector<1x32xf32>
    %cst_89 = arith.constant dense<0.000000e+00> : vector<16xf32>
    %215 = vector.multi_reduction <add>, %212, %cst_89 [1] : vector<16x32xf32> to vector<16xf32>
    %216 = vector.shape_cast %215 : vector<16xf32> to vector<16x1xf32>
    %cst_90 = arith.constant 3.200000e+01 : f32
    %217 = vector.broadcast %cst_90 : f32 to vector<16x1xf32>
    %218 = arith.divf %216, %217 : vector<16x1xf32>
    %219 = vector.broadcast %218 : vector<16x1xf32> to vector<16x32xf32>
    %220 = arith.subf %212, %219 : vector<16x32xf32>
    %221 = arith.mulf %220, %220 : vector<16x32xf32>
    %cst_91 = arith.constant dense<0.000000e+00> : vector<16xf32>
    %222 = vector.multi_reduction <add>, %221, %cst_91 [1] : vector<16x32xf32> to vector<16xf32>
    %223 = vector.shape_cast %222 : vector<16xf32> to vector<16x1xf32>
    %cst_92 = arith.constant 3.200000e+01 : f32
    %224 = vector.broadcast %cst_92 : f32 to vector<16x1xf32>
    %225 = arith.divf %223, %224 : vector<16x1xf32>
    %226 = vector.broadcast %218 : vector<16x1xf32> to vector<16x32xf32>
    %227 = arith.subf %212, %226 : vector<16x32xf32>
    %cst_93 = arith.constant 9.99999974E-6 : f32
    %228 = vector.broadcast %cst_93 : f32 to vector<16x1xf32>
    %229 = arith.addf %225, %228 : vector<16x1xf32>
    %230 = math.rsqrt %229 : vector<16x1xf32>
    %231 = vector.broadcast %230 : vector<16x1xf32> to vector<16x32xf32>
    %232 = arith.mulf %227, %231 : vector<16x32xf32>
    %233 = vector.broadcast %213 : vector<1x32xf32> to vector<16x32xf32>
    %234 = arith.mulf %232, %233 : vector<16x32xf32>
    %235 = vector.broadcast %214 : vector<1x32xf32> to vector<16x32xf32>
    %236 = arith.addf %234, %235 : vector<16x32xf32>
    %c0_94 = arith.constant 0 : index
    %c0_95 = arith.constant 0 : index
    %237 = vector.load %arg13[%c0_94, %c0_95] : memref<16x32xf32, #tpu.memory_space<vmem>>, vector<16x32xf32>
    tpu.vector_store %arg13[%c0_94, %c0_95], %236 {strides = array<i32>} : memref<16x32xf32, #tpu.memory_space<vmem>>, vector<16x32xf32>,
    return
  }
  func.func @transform_0(%arg0: i32) -> (i32, i32) {
    %c0_i32 = arith.constant 0 : i32
    %c0_i32_0 = arith.constant 0 : i32
    return %arg0, %c0_i32 : i32, i32
  }
  func.func @transform_1(%arg0: i32) -> (i32, i32) {
    %c0_i32 = arith.constant 0 : i32
    %c0_i32_0 = arith.constant 0 : i32
    %c0_i32_1 = arith.constant 0 : i32
    return %c0_i32, %c0_i32_0 : i32, i32
  }
  func.func @transform_2(%arg0: i32) -> (i32, i32) {
    %c0_i32 = arith.constant 0 : i32
    %c0_i32_0 = arith.constant 0 : i32
    %c0_i32_1 = arith.constant 0 : i32
    return %c0_i32, %c0_i32_0 : i32, i32
  }
  func.func @transform_3(%arg0: i32) -> (i32, i32) {
    %c0_i32 = arith.constant 0 : i32
    %c0_i32_0 = arith.constant 0 : i32
    %c0_i32_1 = arith.constant 0 : i32
    return %c0_i32, %c0_i32_0 : i32, i32
  }
  func.func @transform_4(%arg0: i32) -> (i32, i32) {
    %c0_i32 = arith.constant 0 : i32
    %c0_i32_0 = arith.constant 0 : i32
    %c0_i32_1 = arith.constant 0 : i32
    return %c0_i32, %c0_i32_0 : i32, i32
  }
  func.func @transform_5(%arg0: i32) -> (i32, i32) {
    %c0_i32 = arith.constant 0 : i32
    %c0_i32_0 = arith.constant 0 : i32
    %c0_i32_1 = arith.constant 0 : i32
    return %c0_i32, %c0_i32_0 : i32, i32
  }
  func.func @transform_6(%arg0: i32) -> (i32, i32) {
    %c0_i32 = arith.constant 0 : i32
    %c0_i32_0 = arith.constant 0 : i32
    %c0_i32_1 = arith.constant 0 : i32
    return %c0_i32, %c0_i32_0 : i32, i32
  }
  func.func @transform_7(%arg0: i32) -> (i32, i32) {
    %c0_i32 = arith.constant 0 : i32
    %c0_i32_0 = arith.constant 0 : i32
    %c0_i32_1 = arith.constant 0 : i32
    return %c0_i32, %c0_i32_0 : i32, i32
  }
  func.func @transform_8(%arg0: i32) -> (i32, i32) {
    %c0_i32 = arith.constant 0 : i32
    %c0_i32_0 = arith.constant 0 : i32
    %c0_i32_1 = arith.constant 0 : i32
    return %c0_i32, %c0_i32_0 : i32, i32
  }
  func.func @transform_9(%arg0: i32) -> (i32, i32) {
    %c0_i32 = arith.constant 0 : i32
    %c0_i32_0 = arith.constant 0 : i32
    %c0_i32_1 = arith.constant 0 : i32
    return %c0_i32, %c0_i32_0 : i32, i32
  }
  func.func @transform_10(%arg0: i32) -> (i32, i32) {
    %c0_i32 = arith.constant 0 : i32
    %c0_i32_0 = arith.constant 0 : i32
    %c0_i32_1 = arith.constant 0 : i32
    return %c0_i32, %c0_i32_0 : i32, i32
  }
  func.func @transform_11(%arg0: i32) -> (i32, i32) {
    %c0_i32 = arith.constant 0 : i32
    %c0_i32_0 = arith.constant 0 : i32
    %c0_i32_1 = arith.constant 0 : i32
    return %c0_i32, %c0_i32_0 : i32, i32
  }
  func.func @transform_12(%arg0: i32) -> (i32, i32) {
    %c0_i32 = arith.constant 0 : i32
    %c0_i32_0 = arith.constant 0 : i32
    return %arg0, %c0_i32 : i32, i32
  }
}

</mosaic_0001>

<llo_original>
// kernel: tpu_custom_call.1
$region0: #{tpu_custom_call.1}
  #allocation0 [shape = 'u32[]', space=smem, size = 0x4, offset = 0x4, fixed_abs, tag = 'smem constant byte address 0x4 - core index']
  #allocation1 [shape = 'u32[144,128]{1,0:T(1,128)}', space=vmem, size = 0x12000, scoped, tag = 'internal scratch']
  #allocation2 [shape = 'f32[16,32]{1,0:T(8,128)}', space=vmem, size = 0x2000, scoped, tag = 'scratch operand']
  %s0 = inlined_call_operand.vmem [shape: f32[16,32], index: 0, kind: input, shape index: {}]
  %s1 = inlined_call_operand.vmem [shape: f32[32,96], index: 1, kind: input, shape index: {}]
  %s2 = inlined_call_operand.vmem [shape: f32[32,32], index: 2, kind: input, shape index: {}]
  %s3 = inlined_call_operand.vmem [shape: f32[1,32], index: 3, kind: input, shape index: {}]
  %s4 = inlined_call_operand.vmem [shape: f32[1,32], index: 4, kind: input, shape index: {}]
  %s5 = inlined_call_operand.vmem [shape: f32[1,32], index: 5, kind: input, shape index: {}]
  %s6 = inlined_call_operand.vmem [shape: f32[32,128], index: 6, kind: input, shape index: {}]
  %s7 = inlined_call_operand.vmem [shape: f32[1,128], index: 7, kind: input, shape index: {}]
  %s8 = inlined_call_operand.vmem [shape: f32[128,32], index: 8, kind: input, shape index: {}]
  %s9 = inlined_call_operand.vmem [shape: f32[1,32], index: 9, kind: input, shape index: {}]
  %s10 = inlined_call_operand.vmem [shape: f32[1,32], index: 10, kind: input, shape index: {}]
  %s11 = inlined_call_operand.vmem [shape: f32[1,32], index: 11, kind: input, shape index: {}]
  %s12 = inlined_call_operand.hbm [shape: f32[16,32], index: 12, kind: output, shape index: {}]
  %s13 = sld [smem:[#allocation0]]
  $region58: #{tpu_custom_call.1} parent=0
    _
  %s15 = ssub.s32 1, %s13
  %s16 = scalar_select 0, %s15, %s13
  $region1: #{tpu_custom_call.1} parent=0
    #allocation3 [shape = 'u8[8192]{0}', space=vmem, size = 0x2000, scoped, tag = 'output window, operand 0, single buffered']
    #allocation4 [shape = 's32[1]{0}', space=sflag, size = 0x4, scoped, tag = 'scoped memory for tpu_custom_call.1']
    %17 = vsyncpa [#allocation4], 0
    // Predicated region
    $region2: #{tpu_custom_call.1} parent=1 // pred_check
      _
    $region3: #{tpu_custom_call.1} parent=1 // pred_check_branch
      %19 = sbr.rel (0) target = $region5
    $region4: #{tpu_custom_call.1} parent=1 // pred_region
      _
    $region5: #{tpu_custom_call.1} parent=1 // pred_fallthru
      _
    // Predicated region
    $region6: #{tpu_custom_call.1} parent=1 // pred_check
      _
    $region7: #{tpu_custom_call.1} parent=1 // pred_check_branch
      %21 = sbr.rel (0) target = $region9
    $region8: #{tpu_custom_call.1} parent=1 // pred_region
      _
    $region9: #{tpu_custom_call.1} parent=1 // pred_fallthru
      _
    // Predicated region
    $region10: #{tpu_custom_call.1} parent=1 // pred_check
      _
    $region11: #{tpu_custom_call.1} parent=1 // pred_check_branch
      %23 = sbr.rel (0) target = $region13
    $region12: #{tpu_custom_call.1} parent=1 // pred_region
      _
    $region13: #{tpu_custom_call.1} parent=1 // pred_fallthru
      _
    // Predicated region
    $region14: #{tpu_custom_call.1} parent=1 // pred_check
      _
    $region15: #{tpu_custom_call.1} parent=1 // pred_check_branch
      %25 = sbr.rel (0) target = $region17
    $region16: #{tpu_custom_call.1} parent=1 // pred_region
      _
    $region17: #{tpu_custom_call.1} parent=1 // pred_fallthru
      _
    // Predicated region
    $region18: #{tpu_custom_call.1} parent=1 // pred_check
      _
    $region19: #{tpu_custom_call.1} parent=1 // pred_check_branch
      %27 = sbr.rel (0) target = $region21
    $region20: #{tpu_custom_call.1} parent=1 // pred_region
      _
    $region21: #{tpu_custom_call.1} parent=1 // pred_fallthru
      _
    // Predicated region
    $region22: #{tpu_custom_call.1} parent=1 // pred_check
      _
    $region23: #{tpu_custom_call.1} parent=1 // pred_check_branch
      %29 = sbr.rel (0) target = $region25
    $region24: #{tpu_custom_call.1} parent=1 // pred_region
      _
    $region25: #{tpu_custom_call.1} parent=1 // pred_fallthru
      _
    // Predicated region
    $region26: #{tpu_custom_call.1} parent=1 // pred_check
      _
    $region27: #{tpu_custom_call.1} parent=1 // pred_check_branch
      %31 = sbr.rel (0) target = $region29
    $region28: #{tpu_custom_call.1} parent=1 // pred_region
      _
    $region29: #{tpu_custom_call.1} parent=1 // pred_fallthru
      _
    // Predicated region
    $region30: #{tpu_custom_call.1} parent=1 // pred_check
      _
    $region31: #{tpu_custom_call.1} parent=1 // pred_check_branch
      %33 = sbr.rel (0) target = $region33
    $region32: #{tpu_custom_call.1} parent=1 // pred_region
      _
    $region33: #{tpu_custom_call.1} parent=1 // pred_fallthru
      _
    // Predicated region
    $region34: #{tpu_custom_call.1} parent=1 // pred_check
      _
    $region35: #{tpu_custom_call.1} parent=1 // pred_check_branch
      %35 = sbr.rel (0) target = $region37
    $region36: #{tpu_custom_call.1} parent=1 // pred_region
      _
    $region37: #{tpu_custom_call.1} parent=1 // pred_fallthru
      _
    // Predicated region
    $region38: #{tpu_custom_call.1} parent=1 // pred_check
      _
    $region39: #{tpu_custom_call.1} parent=1 // pred_check_branch
      %37 = sbr.rel (0) target = $region41
    $region40: #{tpu_custom_call.1} parent=1 // pred_region
      _
    $region41: #{tpu_custom_call.1} parent=1 // pred_fallthru
      _
    // Predicated region
    $region42: #{tpu_custom_call.1} parent=1 // pred_check
      _
    $region43: #{tpu_custom_call.1} parent=1 // pred_check_branch
      %39 = sbr.rel (0) target = $region45
    $region44: #{tpu_custom_call.1} parent=1 // pred_region
      _
    $region45: #{tpu_custom_call.1} parent=1 // pred_fallthru
      _
    // Predicated region
    $region46: #{tpu_custom_call.1} parent=1 // pred_check
      _
    $region47: #{tpu_custom_call.1} parent=1 // pred_check_branch
      %41 = sbr.rel (0) target = $region49
    $region48: #{tpu_custom_call.1} parent=1 // pred_region
      _
    $region49: #{tpu_custom_call.1} parent=1 // pred_fallthru
      _
    %v42 = vld [vmem:[%s0] sm:$0xff]
    %v43 = vld [vmem:[%s0 + $0x8] sm:$0xff]
    %v44 = vld [vmem:[%s1] sm:$0xff]
    %v45 = vld [vmem:[%s1 + $0x8] sm:$0xff]
    %v46 = vld [vmem:[%s1 + $0x10] sm:$0xff]
    %v47 = vld [vmem:[%s1 + $0x18] sm:$0xff]
    %vm48 = vcmask 261120
    %v50 = vsel %vm48, %v42, 0
    %v53 = vsel %vm48, %v43, 0
    %55 = vmatprep.subr.mxu0 0.0
    %56 = vmatpush1.msra.mxu0 0.0
    %57 = vmatprep.subr.mxu0 0.0
    %58 = vmatpush1.msra.mxu0 0.0
    %59 = vmatprep.subr.mxu0 0.0
    %60 = vmatpush1.msra.mxu0 0.0
    %61 = vmatprep.subr.mxu0 0.0
    %62 = vmatpush1.msra.mxu0 0.0
    %63 = vmatprep.subr.mxu0 0.0
    %64 = vmatpush1.msra.mxu0 0.0
    %65 = vmatprep.subr.mxu0 0.0
    %66 = vmatpush1.msra.mxu0 0.0
    %67 = vmatprep.subr.mxu0 0.0
    %68 = vmatpush1.msra.mxu0 0.0
    %69 = vmatprep.subr.mxu0 0.0
    %70 = vmatpush1.msra.mxu0 0.0
    %71 = vmatprep.subr.mxu0 0.0
    %72 = vmatpush1.msra.mxu0 0.0
    %73 = vmatprep.subr.mxu0 0.0
    %74 = vmatpush1.msra.mxu0 0.0
    %75 = vmatprep.subr.mxu0 0.0
    %76 = vmatpush1.msra.mxu0 0.0
    %77 = vmatprep.subr.mxu0 0.0
    %78 = vmatpush1.msra.mxu0 0.0
    %79 = vmatprep.subr.mxu0 0.0
    %80 = vmatpush1.msra.mxu0 %v47
    %81 = vmatprep.subr.mxu0 0.0
    %82 = vmatpush1.msra.mxu0 %v46
    %83 = vmatprep.subr.mxu0 0.0
    %84 = vmatpush1.msra.mxu0 %v45
    %85 = vmatprep.subr.mxu0 0.0
    %86 = vmatpush1.msra.mxu0 %v44
    %87 = vmatprep.subr.mxu0 0.0
    %88 = vmatpush2.msra.mxu0 0.0
    %89 = vmatprep.subr.mxu0 0.0
    %90 = vmatpush2.msra.mxu0 0.0
    %91 = vmatprep.subr.mxu0 0.0
    %92 = vmatpush2.msra.mxu0 0.0
    %93 = vmatprep.subr.mxu0 0.0
    %94 = vmatpush2.msra.mxu0 0.0
    %95 = vmatprep.subr.mxu0 0.0
    %96 = vmatpush2.msra.mxu0 0.0
    %97 = vmatprep.subr.mxu0 0.0
    %98 = vmatpush2.msra.mxu0 0.0
    %99 = vmatprep.subr.mxu0 0.0
    %100 = vmatpush2.msra.mxu0 0.0
    %101 = vmatprep.subr.mxu0 0.0
    %102 = vmatpush2.msra.mxu0 0.0
    %103 = vmatprep.subr.mxu0 0.0
    %104 = vmatpush2.msra.mxu0 0.0
    %105 = vmatprep.subr.mxu0 0.0
    %106 = vmatpush2.msra.mxu0 0.0
    %107 = vmatprep.subr.mxu0 0.0
    %108 = vmatpush2.msra.mxu0 0.0
    %109 = vmatprep.subr.mxu0 0.0
    %110 = vmatpush2.msra.mxu0 0.0
    %111 = vmatprep.subr.mxu0 0.0
    %112 = vmatpush2.msra.mxu0 0.0
    %113 = vmatprep.subr.mxu0 0.0
    %114 = vmatpush2.msra.mxu0 0.0
    %115 = vmatprep.subr.mxu0 0.0
    %116 = vmatpush2.msra.mxu0 0.0
    %117 = vmatprep.subr.mxu0 0.0
    %118 = vmatpush2.msra.mxu0 0.0
    %119 = vmatprep.mubr.f32.mxu0 0.0
    %120 = vmatmul.mubr.f32.gmra.mxu0 %v50
    %v121 = vpop.f32.mrf.mxu0
    %v122 = vadd.f32 0.0, %v121
    %v123 = vpop.f32.mrf.mxu0
    %124 = vmatprep.mubr.f32.mxu0 0.0
    %125 = vmatmul.mubr.f32.gmra.mxu0 %v53
    %v126 = vpop.f32.mrf.mxu0
    %v127 = vadd.f32 0.0, %v126
    %v128 = vpop.f32.mrf.mxu0
    %129 = vdwg.mxu0
    %v130 = vlaneseq
    %v131 = vshrl.u32 %v130, 7
    %v132 = vlaneseq
    %v133 = vand.u32 %v132, 127
    %vm134 = vcmp.le.s32.totalorder %v133, %v131
    %v135 = vsel %vm134, 0.0, -1e+30
    %137 = vrot.lane.b32.xlu0 %v122, 96
    %v138 = vpop.permute.xlu0 %137
    %vm139 = vcmask 64512
    %v140 = vsel %vm139, %v122, 0
    %v142 = vsel %vm139, %v138, 0
    %144 = vmatprep.subr.mxu0 0.0
    %145 = vmatpush1.xpose.msra.mxu0 0.0
    %146 = vmatprep.subr.mxu0 0.0
    %147 = vmatpush1.xpose.msra.mxu0 0.0
    %148 = vmatprep.subr.mxu0 0.0
    %149 = vmatpush1.xpose.msra.mxu0 0.0
    %150 = vmatprep.subr.mxu0 0.0
    %151 = vmatpush1.xpose.msra.mxu0 0.0
    %152 = vmatprep.subr.mxu0 0.0
    %153 = vmatpush1.xpose.msra.mxu0 0.0
    %154 = vmatprep.subr.mxu0 0.0
    %155 = vmatpush1.xpose.msra.mxu0 0.0
    %156 = vmatprep.subr.mxu0 0.0
    %157 = vmatpush1.xpose.msra.mxu0 0.0
    %158 = vmatprep.subr.mxu0 0.0
    %159 = vmatpush1.xpose.msra.mxu0 0.0
    %160 = vmatprep.subr.mxu0 0.0
    %161 = vmatpush1.xpose.msra.mxu0 0.0
    %162 = vmatprep.subr.mxu0 0.0
    %163 = vmatpush1.xpose.msra.mxu0 0.0
    %164 = vmatprep.subr.mxu0 0.0
    %165 = vmatpush1.xpose.msra.mxu0 0.0
    %166 = vmatprep.subr.mxu0 0.0
    %167 = vmatpush1.xpose.msra.mxu0 0.0
    %168 = vmatprep.subr.mxu0 0.0
    %169 = vmatpush1.xpose.msra.mxu0 0.0
    %170 = vmatprep.subr.mxu0 0.0
    %171 = vmatpush1.xpose.msra.mxu0 0.0
    %172 = vmatprep.subr.mxu0 0.0
    %173 = vmatpush1.xpose.msra.mxu0 0.0
    %174 = vmatprep.subr.mxu0 0.0
    %175 = vmatpush1.xpose.msra.mxu0 %v142
    %176 = vmatprep.subr.mxu0 0.0
    %177 = vmatpush2.xpose.msra.mxu0 0.0
    %178 = vmatprep.subr.mxu0 0.0
    %179 = vmatpush2.xpose.msra.mxu0 0.0
    %180 = vmatprep.subr.mxu0 0.0
    %181 = vmatpush2.xpose.msra.mxu0 0.0
    %182 = vmatprep.subr.mxu0 0.0
    %183 = vmatpush2.xpose.msra.mxu0 0.0
    %184 = vmatprep.subr.mxu0 0.0
    %185 = vmatpush2.xpose.msra.mxu0 0.0
    %186 = vmatprep.subr.mxu0 0.0
    %187 = vmatpush2.xpose.msra.mxu0 0.0
    %188 = vmatprep.subr.mxu0 0.0
    %189 = vmatpush2.xpose.msra.mxu0 0.0
    %190 = vmatprep.subr.mxu0 0.0
    %191 = vmatpush2.xpose.msra.mxu0 0.0
    %192 = vmatprep.subr.mxu0 0.0
    %193 = vmatpush2.xpose.msra.mxu0 0.0
    %194 = vmatprep.subr.mxu0 0.0
    %195 = vmatpush2.xpose.msra.mxu0 0.0
    %196 = vmatprep.subr.mxu0 0.0
    %197 = vmatpush2.xpose.msra.mxu0 0.0
    %198 = vmatprep.subr.mxu0 0.0
    %199 = vmatpush2.xpose.msra.mxu0 0.0
    %200 = vmatprep.subr.mxu0 0.0
    %201 = vmatpush2.xpose.msra.mxu0 0.0
    %202 = vmatprep.subr.mxu0 0.0
    %203 = vmatpush2.xpose.msra.mxu0 0.0
    %204 = vmatprep.subr.mxu0 0.0
    %205 = vmatpush2.xpose.msra.mxu0 0.0
    %206 = vmatprep.subr.mxu0 0.0
    %207 = vmatpush2.xpose.msra.mxu0 0.0
    %208 = vmatprep.mubr.f32.mxu0 0.0
    %209 = vmatmul.mubr.f32.gmra.mxu0 %v140
    %v210 = vpop.f32.mrf.mxu0
    %v211 = vadd.f32 0.0, %v210
    %v212 = vpop.f32.mrf.mxu0
    %213 = vdwg.mxu0
    %v214 = vmul.f32 %v211, 0.35355338
    %v215 = vadd.f32 %v214, %v135
    %v216 = vsel %vm139, %v215, -inf
    %217 = vmax.xlane.f32.xlu0 %v216
    %v218 = vpop.xlane.xlu0 %217
    %v219 = vsub.f32 %v215, %v218
    %v220 = vmul.f32 %v219, 1.442695
    %v221 = vpow.pop %v220
    %v222 = vsel %vm139, %v221, 0.0
    %223 = vadd.xlane.f32.xlu0 %v222
    %v224 = vpop.xlane.xlu0 %223
    %v225 = vrcp.pop %v224
    %v226 = vmul.f32 %v221, %v225
    %227 = vrot.lane.b32.xlu0 %v122, 64
    %v228 = vpop.permute.xlu0 %227
    %v231 = vsel %vm139, %v226, 0
    %233 = vmatprep.subr.mxu0 0.0
    %234 = vmatpush1.msra.mxu0 0.0
    %235 = vmatprep.subr.mxu0 0.0
    %236 = vmatpush1.msra.mxu0 0.0
    %237 = vmatprep.subr.mxu0 0.0
    %238 = vmatpush1.msra.mxu0 0.0
    %239 = vmatprep.subr.mxu0 0.0
    %240 = vmatpush1.msra.mxu0 0.0
    %241 = vmatprep.subr.mxu0 0.0
    %242 = vmatpush1.msra.mxu0 0.0
    %243 = vmatprep.subr.mxu0 0.0
    %244 = vmatpush1.msra.mxu0 0.0
    %245 = vmatprep.subr.mxu0 0.0
    %246 = vmatpush1.msra.mxu0 0.0
    %247 = vmatprep.subr.mxu0 0.0
    %248 = vmatpush1.msra.mxu0 0.0
    %249 = vmatprep.subr.mxu0 0.0
    %250 = vmatpush1.msra.mxu0 0.0
    %251 = vmatprep.subr.mxu0 0.0
    %252 = vmatpush1.msra.mxu0 0.0
    %253 = vmatprep.subr.mxu0 0.0
    %254 = vmatpush1.msra.mxu0 0.0
    %255 = vmatprep.subr.mxu0 0.0
    %256 = vmatpush1.msra.mxu0 0.0
    %257 = vmatprep.subr.mxu0 0.0
    %258 = vmatpush1.msra.mxu0 0.0
    %259 = vmatprep.subr.mxu0 0.0
    %260 = vmatpush1.msra.mxu0 0.0
    %261 = vmatprep.subr.mxu0 0.0
    %262 = vmatpush1.msra.mxu0 0.0
    %263 = vmatprep.subr.mxu0 0.0
    %264 = vmatpush1.msra.mxu0 %v228
    %265 = vmatprep.subr.mxu0 0.0
    %266 = vmatpush2.msra.mxu0 0.0
    %267 = vmatprep.subr.mxu0 0.0
    %268 = vmatpush2.msra.mxu0 0.0
    %269 = vmatprep.subr.mxu0 0.0
    %270 = vmatpush2.msra.mxu0 0.0
    %271 = vmatprep.subr.mxu0 0.0
    %272 = vmatpush2.msra.mxu0 0.0
    %273 = vmatprep.subr.mxu0 0.0
    %274 = vmatpush2.msra.mxu0 0.0
    %275 = vmatprep.subr.mxu0 0.0
    %276 = vmatpush2.msra.mxu0 0.0
    %277 = vmatprep.subr.mxu0 0.0
    %278 = vmatpush2.msra.mxu0 0.0
    %279 = vmatprep.subr.mxu0 0.0
    %280 = vmatpush2.msra.mxu0 0.0
    %281 = vmatprep.subr.mxu0 0.0
    %282 = vmatpush2.msra.mxu0 0.0
    %283 = vmatprep.subr.mxu0 0.0
    %284 = vmatpush2.msra.mxu0 0.0
    %285 = vmatprep.subr.mxu0 0.0
    %286 = vmatpush2.msra.mxu0 0.0
    %287 = vmatprep.subr.mxu0 0.0
    %288 = vmatpush2.msra.mxu0 0.0
    %289 = vmatprep.subr.mxu0 0.0
    %290 = vmatpush2.msra.mxu0 0.0
    %291 = vmatprep.subr.mxu0 0.0
    %292 = vmatpush2.msra.mxu0 0.0
    %293 = vmatprep.subr.mxu0 0.0
    %294 = vmatpush2.msra.mxu0 0.0
    %295 = vmatprep.subr.mxu0 0.0
    %296 = vmatpush2.msra.mxu0 0.0
    %297 = vmatprep.mubr.f32.mxu0 0.0
    %298 = vmatmul.mubr.f32.gmra.mxu0 %v231
    %v299 = vpop.f32.mrf.mxu0
    %v300 = vadd.f32 0.0, %v299
    %v301 = vpop.f32.mrf.mxu0
    %302 = vdwg.mxu0
    %303 = vst.msk [vmem:[#allocation2] sm:$0xff] %vm139, %v300
    %304 = vrot.lane.b32.xlu0 %v122, 120
    %v305 = vpop.permute.xlu0 %304
    %306 = vrot.lane.b32.xlu0 %v122, 88
    %v307 = vpop.permute.xlu0 %306
    %v308 = vsel %vm139, %v305, 0
    %v310 = vsel %vm139, %v307, 0
    %312 = vmatprep.subr.mxu0 0.0
    %313 = vmatpush1.xpose.msra.mxu0 0.0
    %314 = vmatprep.subr.mxu0 0.0
    %315 = vmatpush1.xpose.msra.mxu0 0.0
    %316 = vmatprep.subr.mxu0 0.0
    %317 = vmatpush1.xpose.msra.mxu0 0.0
    %318 = vmatprep.subr.mxu0 0.0
    %319 = vmatpush1.xpose.msra.mxu0 0.0
    %320 = vmatprep.subr.mxu0 0.0
    %321 = vmatpush1.xpose.msra.mxu0 0.0
    %322 = vmatprep.subr.mxu0 0.0
    %323 = vmatpush1.xpose.msra.mxu0 0.0
    %324 = vmatprep.subr.mxu0 0.0
    %325 = vmatpush1.xpose.msra.mxu0 0.0
    %326 = vmatprep.subr.mxu0 0.0
    %327 = vmatpush1.xpose.msra.mxu0 0.0
    %328 = vmatprep.subr.mxu0 0.0
    %329 = vmatpush1.xpose.msra.mxu0 0.0
    %330 = vmatprep.subr.mxu0 0.0
    %331 = vmatpush1.xpose.msra.mxu0 0.0
    %332 = vmatprep.subr.mxu0 0.0
    %333 = vmatpush1.xpose.msra.mxu0 0.0
    %334 = vmatprep.subr.mxu0 0.0
    %335 = vmatpush1.xpose.msra.mxu0 0.0
    %336 = vmatprep.subr.mxu0 0.0
    %337 = vmatpush1.xpose.msra.mxu0 0.0
    %338 = vmatprep.subr.mxu0 0.0
    %339 = vmatpush1.xpose.msra.mxu0 0.0
    %340 = vmatprep.subr.mxu0 0.0
    %341 = vmatpush1.xpose.msra.mxu0 0.0
    %342 = vmatprep.subr.mxu0 0.0
    %343 = vmatpush1.xpose.msra.mxu0 %v310
    %344 = vmatprep.subr.mxu0 0.0
    %345 = vmatpush2.xpose.msra.mxu0 0.0
    %346 = vmatprep.subr.mxu0 0.0
    %347 = vmatpush2.xpose.msra.mxu0 0.0
    %348 = vmatprep.subr.mxu0 0.0
    %349 = vmatpush2.xpose.msra.mxu0 0.0
    %350 = vmatprep.subr.mxu0 0.0
    %351 = vmatpush2.xpose.msra.mxu0 0.0
    %352 = vmatprep.subr.mxu0 0.0
    %353 = vmatpush2.xpose.msra.mxu0 0.0
    %354 = vmatprep.subr.mxu0 0.0
    %355 = vmatpush2.xpose.msra.mxu0 0.0
    %356 = vmatprep.subr.mxu0 0.0
    %357 = vmatpush2.xpose.msra.mxu0 0.0
    %358 = vmatprep.subr.mxu0 0.0
    %359 = vmatpush2.xpose.msra.mxu0 0.0
    %360 = vmatprep.subr.mxu0 0.0
    %361 = vmatpush2.xpose.msra.mxu0 0.0
    %362 = vmatprep.subr.mxu0 0.0
    %363 = vmatpush2.xpose.msra.mxu0 0.0
    %364 = vmatprep.subr.mxu0 0.0
    %365 = vmatpush2.xpose.msra.mxu0 0.0
    %366 = vmatprep.subr.mxu0 0.0
    %367 = vmatpush2.xpose.msra.mxu0 0.0
    %368 = vmatprep.subr.mxu0 0.0
    %369 = vmatpush2.xpose.msra.mxu0 0.0
    %370 = vmatprep.subr.mxu0 0.0
    %371 = vmatpush2.xpose.msra.mxu0 0.0
    %372 = vmatprep.subr.mxu0 0.0
    %373 = vmatpush2.xpose.msra.mxu0 0.0
    %374 = vmatprep.subr.mxu0 0.0
    %375 = vmatpush2.xpose.msra.mxu0 0.0
    %376 = vmatprep.mubr.f32.mxu0 0.0
    %377 = vmatmul.mubr.f32.gmra.mxu0 %v308
    %v378 = vpop.f32.mrf.mxu0
    %v379 = vadd.f32 0.0, %v378
    %v380 = vpop.f32.mrf.mxu0
    %381 = vdwg.mxu0
    %v382 = vmul.f32 %v379, 0.35355338
    %v383 = vadd.f32 %v382, %v135
    %v384 = vsel %vm139, %v383, -inf
    %385 = vmax.xlane.f32.xlu0 %v384
    %v386 = vpop.xlane.xlu0 %385
    %v387 = vsub.f32 %v383, %v386
    %v388 = vmul.f32 %v387, 1.442695
    %v389 = vpow.pop %v388
    %v390 = vsel %vm139, %v389, 0.0
    %391 = vadd.xlane.f32.xlu0 %v390
    %v392 = vpop.xlane.xlu0 %391
    %v393 = vrcp.pop %v392
    %v394 = vmul.f32 %v389, %v393
    %395 = vrot.lane.b32.xlu0 %v122, 56
    %v396 = vpop.permute.xlu0 %395
    %v399 = vsel %vm139, %v394, 0
    %401 = vmatprep.subr.mxu0 0.0
    %402 = vmatpush1.msra.mxu0 0.0
    %403 = vmatprep.subr.mxu0 0.0
    %404 = vmatpush1.msra.mxu0 0.0
    %405 = vmatprep.subr.mxu0 0.0
    %406 = vmatpush1.msra.mxu0 0.0
    %407 = vmatprep.subr.mxu0 0.0
    %408 = vmatpush1.msra.mxu0 0.0
    %409 = vmatprep.subr.mxu0 0.0
    %410 = vmatpush1.msra.mxu0 0.0
    %411 = vmatprep.subr.mxu0 0.0
    %412 = vmatpush1.msra.mxu0 0.0
    %413 = vmatprep.subr.mxu0 0.0
    %414 = vmatpush1.msra.mxu0 0.0
    %415 = vmatprep.subr.mxu0 0.0
    %416 = vmatpush1.msra.mxu0 0.0
    %417 = vmatprep.subr.mxu0 0.0
    %418 = vmatpush1.msra.mxu0 0.0
    %419 = vmatprep.subr.mxu0 0.0
    %420 = vmatpush1.msra.mxu0 0.0
    %421 = vmatprep.subr.mxu0 0.0
    %422 = vmatpush1.msra.mxu0 0.0
    %423 = vmatprep.subr.mxu0 0.0
    %424 = vmatpush1.msra.mxu0 0.0
    %425 = vmatprep.subr.mxu0 0.0
    %426 = vmatpush1.msra.mxu0 0.0
    %427 = vmatprep.subr.mxu0 0.0
    %428 = vmatpush1.msra.mxu0 0.0
    %429 = vmatprep.subr.mxu0 0.0
    %430 = vmatpush1.msra.mxu0 0.0
    %431 = vmatprep.subr.mxu0 0.0
    %432 = vmatpush1.msra.mxu0 %v396
    %433 = vmatprep.subr.mxu0 0.0
    %434 = vmatpush2.msra.mxu0 0.0
    %435 = vmatprep.subr.mxu0 0.0
    %436 = vmatpush2.msra.mxu0 0.0
    %437 = vmatprep.subr.mxu0 0.0
    %438 = vmatpush2.msra.mxu0 0.0
    %439 = vmatprep.subr.mxu0 0.0
    %440 = vmatpush2.msra.mxu0 0.0
    %441 = vmatprep.subr.mxu0 0.0
    %442 = vmatpush2.msra.mxu0 0.0
    %443 = vmatprep.subr.mxu0 0.0
    %444 = vmatpush2.msra.mxu0 0.0
    %445 = vmatprep.subr.mxu0 0.0
    %446 = vmatpush2.msra.mxu0 0.0
    %447 = vmatprep.subr.mxu0 0.0
    %448 = vmatpush2.msra.mxu0 0.0
    %449 = vmatprep.subr.mxu0 0.0
    %450 = vmatpush2.msra.mxu0 0.0
    %451 = vmatprep.subr.mxu0 0.0
    %452 = vmatpush2.msra.mxu0 0.0
    %453 = vmatprep.subr.mxu0 0.0
    %454 = vmatpush2.msra.mxu0 0.0
    %455 = vmatprep.subr.mxu0 0.0
    %456 = vmatpush2.msra.mxu0 0.0
    %457 = vmatprep.subr.mxu0 0.0
    %458 = vmatpush2.msra.mxu0 0.0
    %459 = vmatprep.subr.mxu0 0.0
    %460 = vmatpush2.msra.mxu0 0.0
    %461 = vmatprep.subr.mxu0 0.0
    %462 = vmatpush2.msra.mxu0 0.0
    %463 = vmatprep.subr.mxu0 0.0
    %464 = vmatpush2.msra.mxu0 0.0
    %465 = vmatprep.mubr.f32.mxu0 0.0
    %466 = vmatmul.mubr.f32.gmra.mxu0 %v399
    %v467 = vpop.f32.mrf.mxu0
    %v468 = vadd.f32 0.0, %v467
    %v469 = vpop.f32.mrf.mxu0
    %470 = vdwg.mxu0
    %472 = vrot.lane.b32.xlu0 %v468, 8
    %v473 = vpop.permute.xlu0 %472
    %vm475 = vcmask 130112
    %476 = vst.msk [vmem:[#allocation2] sm:$0xff] %vm475, %v473
    %477 = vrot.lane.b32.xlu0 %v122, 112
    %v478 = vpop.permute.xlu0 %477
    %479 = vrot.lane.b32.xlu0 %v122, 80
    %v480 = vpop.permute.xlu0 %479
    %v481 = vsel %vm139, %v478, 0
    %v483 = vsel %vm139, %v480, 0
    %485 = vmatprep.subr.mxu0 0.0
    %486 = vmatpush1.xpose.msra.mxu0 0.0
    %487 = vmatprep.subr.mxu0 0.0
    %488 = vmatpush1.xpose.msra.mxu0 0.0
    %489 = vmatprep.subr.mxu0 0.0
    %490 = vmatpush1.xpose.msra.mxu0 0.0
    %491 = vmatprep.subr.mxu0 0.0
    %492 = vmatpush1.xpose.msra.mxu0 0.0
    %493 = vmatprep.subr.mxu0 0.0
    %494 = vmatpush1.xpose.msra.mxu0 0.0
    %495 = vmatprep.subr.mxu0 0.0
    %496 = vmatpush1.xpose.msra.mxu0 0.0
    %497 = vmatprep.subr.mxu0 0.0
    %498 = vmatpush1.xpose.msra.mxu0 0.0
    %499 = vmatprep.subr.mxu0 0.0
    %500 = vmatpush1.xpose.msra.mxu0 0.0
    %501 = vmatprep.subr.mxu0 0.0
    %502 = vmatpush1.xpose.msra.mxu0 0.0
    %503 = vmatprep.subr.mxu0 0.0
    %504 = vmatpush1.xpose.msra.mxu0 0.0
    %505 = vmatprep.subr.mxu0 0.0
    %506 = vmatpush1.xpose.msra.mxu0 0.0
    %507 = vmatprep.subr.mxu0 0.0
    %508 = vmatpush1.xpose.msra.mxu0 0.0
    %509 = vmatprep.subr.mxu0 0.0
    %510 = vmatpush1.xpose.msra.mxu0 0.0
    %511 = vmatprep.subr.mxu0 0.0
    %512 = vmatpush1.xpose.msra.mxu0 0.0
    %513 = vmatprep.subr.mxu0 0.0
    %514 = vmatpush1.xpose.msra.mxu0 0.0
    %515 = vmatprep.subr.mxu0 0.0
    %516 = vmatpush1.xpose.msra.mxu0 %v483
    %517 = vmatprep.subr.mxu0 0.0
    %518 = vmatpush2.xpose.msra.mxu0 0.0
    %519 = vmatprep.subr.mxu0 0.0
    %520 = vmatpush2.xpose.msra.mxu0 0.0
    %521 = vmatprep.subr.mxu0 0.0
    %522 = vmatpush2.xpose.msra.mxu0 0.0
    %523 = vmatprep.subr.mxu0 0.0
    %524 = vmatpush2.xpose.msra.mxu0 0.0
    %525 = vmatprep.subr.mxu0 0.0
    %526 = vmatpush2.xpose.msra.mxu0 0.0
    %527 = vmatprep.subr.mxu0 0.0
    %528 = vmatpush2.xpose.msra.mxu0 0.0
    %529 = vmatprep.subr.mxu0 0.0
    %530 = vmatpush2.xpose.msra.mxu0 0.0
    %531 = vmatprep.subr.mxu0 0.0
    %532 = vmatpush2.xpose.msra.mxu0 0.0
    %533 = vmatprep.subr.mxu0 0.0
    %534 = vmatpush2.xpose.msra.mxu0 0.0
    %535 = vmatprep.subr.mxu0 0.0
    %536 = vmatpush2.xpose.msra.mxu0 0.0
    %537 = vmatprep.subr.mxu0 0.0
    %538 = vmatpush2.xpose.msra.mxu0 0.0
    %539 = vmatprep.subr.mxu0 0.0
    %540 = vmatpush2.xpose.msra.mxu0 0.0
    %541 = vmatprep.subr.mxu0 0.0
    %542 = vmatpush2.xpose.msra.mxu0 0.0
    %543 = vmatprep.subr.mxu0 0.0
    %544 = vmatpush2.xpose.msra.mxu0 0.0
    %545 = vmatprep.subr.mxu0 0.0
    %546 = vmatpush2.xpose.msra.mxu0 0.0
    %547 = vmatprep.subr.mxu0 0.0
    %548 = vmatpush2.xpose.msra.mxu0 0.0
    %549 = vmatprep.mubr.f32.mxu0 0.0
    %550 = vmatmul.mubr.f32.gmra.mxu0 %v481
    %v551 = vpop.f32.mrf.mxu0
    %v552 = vadd.f32 0.0, %v551
    %v553 = vpop.f32.mrf.mxu0
    %554 = vdwg.mxu0
    %v555 = vmul.f32 %v552, 0.35355338
    %v556 = vadd.f32 %v555, %v135
    %v557 = vsel %vm139, %v556, -inf
    %558 = vmax.xlane.f32.xlu0 %v557
    %v559 = vpop.xlane.xlu0 %558
    %v560 = vsub.f32 %v556, %v559
    %v561 = vmul.f32 %v560, 1.442695
    %v562 = vpow.pop %v561
    %v563 = vsel %vm139, %v562, 0.0
    %564 = vadd.xlane.f32.xlu0 %v563
    %v565 = vpop.xlane.xlu0 %564
    %v566 = vrcp.pop %v565
    %v567 = vmul.f32 %v562, %v566
    %568 = vrot.lane.b32.xlu0 %v122, 48
    %v569 = vpop.permute.xlu0 %568
    %v572 = vsel %vm139, %v567, 0
    %574 = vmatprep.subr.mxu0 0.0
    %575 = vmatpush1.msra.mxu0 0.0
    %576 = vmatprep.subr.mxu0 0.0
    %577 = vmatpush1.msra.mxu0 0.0
    %578 = vmatprep.subr.mxu0 0.0
    %579 = vmatpush1.msra.mxu0 0.0
    %580 = vmatprep.subr.mxu0 0.0
    %581 = vmatpush1.msra.mxu0 0.0
    %582 = vmatprep.subr.mxu0 0.0
    %583 = vmatpush1.msra.mxu0 0.0
    %584 = vmatprep.subr.mxu0 0.0
    %585 = vmatpush1.msra.mxu0 0.0
    %586 = vmatprep.subr.mxu0 0.0
    %587 = vmatpush1.msra.mxu0 0.0
    %588 = vmatprep.subr.mxu0 0.0
    %589 = vmatpush1.msra.mxu0 0.0
    %590 = vmatprep.subr.mxu0 0.0
    %591 = vmatpush1.msra.mxu0 0.0
    %592 = vmatprep.subr.mxu0 0.0
    %593 = vmatpush1.msra.mxu0 0.0
    %594 = vmatprep.subr.mxu0 0.0
    %595 = vmatpush1.msra.mxu0 0.0
    %596 = vmatprep.subr.mxu0 0.0
    %597 = vmatpush1.msra.mxu0 0.0
    %598 = vmatprep.subr.mxu0 0.0
    %599 = vmatpush1.msra.mxu0 0.0
    %600 = vmatprep.subr.mxu0 0.0
    %601 = vmatpush1.msra.mxu0 0.0
    %602 = vmatprep.subr.mxu0 0.0
    %603 = vmatpush1.msra.mxu0 0.0
    %604 = vmatprep.subr.mxu0 0.0
    %605 = vmatpush1.msra.mxu0 %v569
    %606 = vmatprep.subr.mxu0 0.0
    %607 = vmatpush2.msra.mxu0 0.0
    %608 = vmatprep.subr.mxu0 0.0
    %609 = vmatpush2.msra.mxu0 0.0
    %610 = vmatprep.subr.mxu0 0.0
    %611 = vmatpush2.msra.mxu0 0.0
    %612 = vmatprep.subr.mxu0 0.0
    %613 = vmatpush2.msra.mxu0 0.0
    %614 = vmatprep.subr.mxu0 0.0
    %615 = vmatpush2.msra.mxu0 0.0
    %616 = vmatprep.subr.mxu0 0.0
    %617 = vmatpush2.msra.mxu0 0.0
    %618 = vmatprep.subr.mxu0 0.0
    %619 = vmatpush2.msra.mxu0 0.0
    %620 = vmatprep.subr.mxu0 0.0
    %621 = vmatpush2.msra.mxu0 0.0
    %622 = vmatprep.subr.mxu0 0.0
    %623 = vmatpush2.msra.mxu0 0.0
    %624 = vmatprep.subr.mxu0 0.0
    %625 = vmatpush2.msra.mxu0 0.0
    %626 = vmatprep.subr.mxu0 0.0
    %627 = vmatpush2.msra.mxu0 0.0
    %628 = vmatprep.subr.mxu0 0.0
    %629 = vmatpush2.msra.mxu0 0.0
    %630 = vmatprep.subr.mxu0 0.0
    %631 = vmatpush2.msra.mxu0 0.0
    %632 = vmatprep.subr.mxu0 0.0
    %633 = vmatpush2.msra.mxu0 0.0
    %634 = vmatprep.subr.mxu0 0.0
    %635 = vmatpush2.msra.mxu0 0.0
    %636 = vmatprep.subr.mxu0 0.0
    %637 = vmatpush2.msra.mxu0 0.0
    %638 = vmatprep.mubr.f32.mxu0 0.0
    %639 = vmatmul.mubr.f32.gmra.mxu0 %v572
    %v640 = vpop.f32.mrf.mxu0
    %v641 = vadd.f32 0.0, %v640
    %v642 = vpop.f32.mrf.mxu0
    %643 = vdwg.mxu0
    %645 = vrot.lane.b32.xlu0 %v641, 16
    %v646 = vpop.permute.xlu0 %645
    %vm648 = vcmask 195712
    %649 = vst.msk [vmem:[#allocation2] sm:$0xff] %vm648, %v646
    %650 = vrot.lane.b32.xlu0 %v122, 104
    %v651 = vpop.permute.xlu0 %650
    %652 = vrot.lane.b32.xlu0 %v122, 72
    %v653 = vpop.permute.xlu0 %652
    %v654 = vsel %vm139, %v651, 0
    %v656 = vsel %vm139, %v653, 0
    %658 = vmatprep.subr.mxu0 0.0
    %659 = vmatpush1.xpose.msra.mxu0 0.0
    %660 = vmatprep.subr.mxu0 0.0
    %661 = vmatpush1.xpose.msra.mxu0 0.0
    %662 = vmatprep.subr.mxu0 0.0
    %663 = vmatpush1.xpose.msra.mxu0 0.0
    %664 = vmatprep.subr.mxu0 0.0
    %665 = vmatpush1.xpose.msra.mxu0 0.0
    %666 = vmatprep.subr.mxu0 0.0
    %667 = vmatpush1.xpose.msra.mxu0 0.0
    %668 = vmatprep.subr.mxu0 0.0
    %669 = vmatpush1.xpose.msra.mxu0 0.0
    %670 = vmatprep.subr.mxu0 0.0
    %671 = vmatpush1.xpose.msra.mxu0 0.0
    %672 = vmatprep.subr.mxu0 0.0
    %673 = vmatpush1.xpose.msra.mxu0 0.0
    %674 = vmatprep.subr.mxu0 0.0
    %675 = vmatpush1.xpose.msra.mxu0 0.0
    %676 = vmatprep.subr.mxu0 0.0
    %677 = vmatpush1.xpose.msra.mxu0 0.0
    %678 = vmatprep.subr.mxu0 0.0
    %679 = vmatpush1.xpose.msra.mxu0 0.0
    %680 = vmatprep.subr.mxu0 0.0
    %681 = vmatpush1.xpose.msra.mxu0 0.0
    %682 = vmatprep.subr.mxu0 0.0
    %683 = vmatpush1.xpose.msra.mxu0 0.0
    %684 = vmatprep.subr.mxu0 0.0
    %685 = vmatpush1.xpose.msra.mxu0 0.0
    %686 = vmatprep.subr.mxu0 0.0
    %687 = vmatpush1.xpose.msra.mxu0 0.0
    %688 = vmatprep.subr.mxu0 0.0
    %689 = vmatpush1.xpose.msra.mxu0 %v656
    %690 = vmatprep.subr.mxu0 0.0
    %691 = vmatpush2.xpose.msra.mxu0 0.0
    %692 = vmatprep.subr.mxu0 0.0
    %693 = vmatpush2.xpose.msra.mxu0 0.0
    %694 = vmatprep.subr.mxu0 0.0
    %695 = vmatpush2.xpose.msra.mxu0 0.0
    %696 = vmatprep.subr.mxu0 0.0
    %697 = vmatpush2.xpose.msra.mxu0 0.0
    %698 = vmatprep.subr.mxu0 0.0
    %699 = vmatpush2.xpose.msra.mxu0 0.0
    %700 = vmatprep.subr.mxu0 0.0
    %701 = vmatpush2.xpose.msra.mxu0 0.0
    %702 = vmatprep.subr.mxu0 0.0
    %703 = vmatpush2.xpose.msra.mxu0 0.0
    %704 = vmatprep.subr.mxu0 0.0
    %705 = vmatpush2.xpose.msra.mxu0 0.0
    %706 = vmatprep.subr.mxu0 0.0
    %707 = vmatpush2.xpose.msra.mxu0 0.0
    %708 = vmatprep.subr.mxu0 0.0
    %709 = vmatpush2.xpose.msra.mxu0 0.0
    %710 = vmatprep.subr.mxu0 0.0
    %711 = vmatpush2.xpose.msra.mxu0 0.0
    %712 = vmatprep.subr.mxu0 0.0
    %713 = vmatpush2.xpose.msra.mxu0 0.0
    %714 = vmatprep.subr.mxu0 0.0
    %715 = vmatpush2.xpose.msra.mxu0 0.0
    %716 = vmatprep.subr.mxu0 0.0
    %717 = vmatpush2.xpose.msra.mxu0 0.0
    %718 = vmatprep.subr.mxu0 0.0
    %719 = vmatpush2.xpose.msra.mxu0 0.0
    %720 = vmatprep.subr.mxu0 0.0
    %721 = vmatpush2.xpose.msra.mxu0 0.0
    %722 = vmatprep.mubr.f32.mxu0 0.0
    %723 = vmatmul.mubr.f32.gmra.mxu0 %v654
    %v724 = vpop.f32.mrf.mxu0
    %v725 = vadd.f32 0.0, %v724
    %v726 = vpop.f32.mrf.mxu0
    %727 = vdwg.mxu0
    %v728 = vmul.f32 %v725, 0.35355338
    %v729 = vadd.f32 %v728, %v135
    %v730 = vsel %vm139, %v729, -inf
    %731 = vmax.xlane.f32.xlu0 %v730
    %v732 = vpop.xlane.xlu0 %731
    %v733 = vsub.f32 %v729, %v732
    %v734 = vmul.f32 %v733, 1.442695
    %v735 = vpow.pop %v734
    %v736 = vsel %vm139, %v735, 0.0
    %737 = vadd.xlane.f32.xlu0 %v736
    %v738 = vpop.xlane.xlu0 %737
    %v739 = vrcp.pop %v738
    %v740 = vmul.f32 %v735, %v739
    %741 = vrot.lane.b32.xlu0 %v122, 40
    %v742 = vpop.permute.xlu0 %741
    %v745 = vsel %vm139, %v740, 0
    %747 = vmatprep.subr.mxu0 0.0
    %748 = vmatpush1.msra.mxu0 0.0
    %749 = vmatprep.subr.mxu0 0.0
    %750 = vmatpush1.msra.mxu0 0.0
    %751 = vmatprep.subr.mxu0 0.0
    %752 = vmatpush1.msra.mxu0 0.0
    %753 = vmatprep.subr.mxu0 0.0
    %754 = vmatpush1.msra.mxu0 0.0
    %755 = vmatprep.subr.mxu0 0.0
    %756 = vmatpush1.msra.mxu0 0.0
    %757 = vmatprep.subr.mxu0 0.0
    %758 = vmatpush1.msra.mxu0 0.0
    %759 = vmatprep.subr.mxu0 0.0
    %760 = vmatpush1.msra.mxu0 0.0
    %761 = vmatprep.subr.mxu0 0.0
    %762 = vmatpush1.msra.mxu0 0.0
    %763 = vmatprep.subr.mxu0 0.0
    %764 = vmatpush1.msra.mxu0 0.0
    %765 = vmatprep.subr.mxu0 0.0
    %766 = vmatpush1.msra.mxu0 0.0
    %767 = vmatprep.subr.mxu0 0.0
    %768 = vmatpush1.msra.mxu0 0.0
    %769 = vmatprep.subr.mxu0 0.0
    %770 = vmatpush1.msra.mxu0 0.0
    %771 = vmatprep.subr.mxu0 0.0
    %772 = vmatpush1.msra.mxu0 0.0
    %773 = vmatprep.subr.mxu0 0.0
    %774 = vmatpush1.msra.mxu0 0.0
    %775 = vmatprep.subr.mxu0 0.0
    %776 = vmatpush1.msra.mxu0 0.0
    %777 = vmatprep.subr.mxu0 0.0
    %778 = vmatpush1.msra.mxu0 %v742
    %779 = vmatprep.subr.mxu0 0.0
    %780 = vmatpush2.msra.mxu0 0.0
    %781 = vmatprep.subr.mxu0 0.0
    %782 = vmatpush2.msra.mxu0 0.0
    %783 = vmatprep.subr.mxu0 0.0
    %784 = vmatpush2.msra.mxu0 0.0
    %785 = vmatprep.subr.mxu0 0.0
    %786 = vmatpush2.msra.mxu0 0.0
    %787 = vmatprep.subr.mxu0 0.0
    %788 = vmatpush2.msra.mxu0 0.0
    %789 = vmatprep.subr.mxu0 0.0
    %790 = vmatpush2.msra.mxu0 0.0
    %791 = vmatprep.subr.mxu0 0.0
    %792 = vmatpush2.msra.mxu0 0.0
    %793 = vmatprep.subr.mxu0 0.0
    %794 = vmatpush2.msra.mxu0 0.0
    %795 = vmatprep.subr.mxu0 0.0
    %796 = vmatpush2.msra.mxu0 0.0
    %797 = vmatprep.subr.mxu0 0.0
    %798 = vmatpush2.msra.mxu0 0.0
    %799 = vmatprep.subr.mxu0 0.0
    %800 = vmatpush2.msra.mxu0 0.0
    %801 = vmatprep.subr.mxu0 0.0
    %802 = vmatpush2.msra.mxu0 0.0
    %803 = vmatprep.subr.mxu0 0.0
    %804 = vmatpush2.msra.mxu0 0.0
    %805 = vmatprep.subr.mxu0 0.0
    %806 = vmatpush2.msra.mxu0 0.0
    %807 = vmatprep.subr.mxu0 0.0
    %808 = vmatpush2.msra.mxu0 0.0
    %809 = vmatprep.subr.mxu0 0.0
    %810 = vmatpush2.msra.mxu0 0.0
    %811 = vmatprep.mubr.f32.mxu0 0.0
    %812 = vmatmul.mubr.f32.gmra.mxu0 %v745
    %v813 = vpop.f32.mrf.mxu0
    %v814 = vadd.f32 0.0, %v813
    %v815 = vpop.f32.mrf.mxu0
    %816 = vdwg.mxu0
    %818 = vrot.lane.b32.xlu0 %v814, 24
    %v819 = vpop.permute.xlu0 %818
    %vm821 = vcmask 261312
    %822 = vst.msk [vmem:[#allocation2] sm:$0xff] %vm821, %v819
    %824 = vrot.lane.b32.xlu0 %v127, 96
    %v825 = vpop.permute.xlu0 %824
    %v826 = vsel %vm139, %v127, 0
    %v828 = vsel %vm139, %v825, 0
    %830 = vmatprep.subr.mxu0 0.0
    %831 = vmatpush1.xpose.msra.mxu0 0.0
    %832 = vmatprep.subr.mxu0 0.0
    %833 = vmatpush1.xpose.msra.mxu0 0.0
    %834 = vmatprep.subr.mxu0 0.0
    %835 = vmatpush1.xpose.msra.mxu0 0.0
    %836 = vmatprep.subr.mxu0 0.0
    %837 = vmatpush1.xpose.msra.mxu0 0.0
    %838 = vmatprep.subr.mxu0 0.0
    %839 = vmatpush1.xpose.msra.mxu0 0.0
    %840 = vmatprep.subr.mxu0 0.0
    %841 = vmatpush1.xpose.msra.mxu0 0.0
    %842 = vmatprep.subr.mxu0 0.0
    %843 = vmatpush1.xpose.msra.mxu0 0.0
    %844 = vmatprep.subr.mxu0 0.0
    %845 = vmatpush1.xpose.msra.mxu0 0.0
    %846 = vmatprep.subr.mxu0 0.0
    %847 = vmatpush1.xpose.msra.mxu0 0.0
    %848 = vmatprep.subr.mxu0 0.0
    %849 = vmatpush1.xpose.msra.mxu0 0.0
    %850 = vmatprep.subr.mxu0 0.0
    %851 = vmatpush1.xpose.msra.mxu0 0.0
    %852 = vmatprep.subr.mxu0 0.0
    %853 = vmatpush1.xpose.msra.mxu0 0.0
    %854 = vmatprep.subr.mxu0 0.0
    %855 = vmatpush1.xpose.msra.mxu0 0.0
    %856 = vmatprep.subr.mxu0 0.0
    %857 = vmatpush1.xpose.msra.mxu0 0.0
    %858 = vmatprep.subr.mxu0 0.0
    %859 = vmatpush1.xpose.msra.mxu0 0.0
    %860 = vmatprep.subr.mxu0 0.0
    %861 = vmatpush1.xpose.msra.mxu0 %v828
    %862 = vmatprep.subr.mxu0 0.0
    %863 = vmatpush2.xpose.msra.mxu0 0.0
    %864 = vmatprep.subr.mxu0 0.0
    %865 = vmatpush2.xpose.msra.mxu0 0.0
    %866 = vmatprep.subr.mxu0 0.0
    %867 = vmatpush2.xpose.msra.mxu0 0.0
    %868 = vmatprep.subr.mxu0 0.0
    %869 = vmatpush2.xpose.msra.mxu0 0.0
    %870 = vmatprep.subr.mxu0 0.0
    %871 = vmatpush2.xpose.msra.mxu0 0.0
    %872 = vmatprep.subr.mxu0 0.0
    %873 = vmatpush2.xpose.msra.mxu0 0.0
    %874 = vmatprep.subr.mxu0 0.0
    %875 = vmatpush2.xpose.msra.mxu0 0.0
    %876 = vmatprep.subr.mxu0 0.0
    %877 = vmatpush2.xpose.msra.mxu0 0.0
    %878 = vmatprep.subr.mxu0 0.0
    %879 = vmatpush2.xpose.msra.mxu0 0.0
    %880 = vmatprep.subr.mxu0 0.0
    %881 = vmatpush2.xpose.msra.mxu0 0.0
    %882 = vmatprep.subr.mxu0 0.0
    %883 = vmatpush2.xpose.msra.mxu0 0.0
    %884 = vmatprep.subr.mxu0 0.0
    %885 = vmatpush2.xpose.msra.mxu0 0.0
    %886 = vmatprep.subr.mxu0 0.0
    %887 = vmatpush2.xpose.msra.mxu0 0.0
    %888 = vmatprep.subr.mxu0 0.0
    %889 = vmatpush2.xpose.msra.mxu0 0.0
    %890 = vmatprep.subr.mxu0 0.0
    %891 = vmatpush2.xpose.msra.mxu0 0.0
    %892 = vmatprep.subr.mxu0 0.0
    %893 = vmatpush2.xpose.msra.mxu0 0.0
    %894 = vmatprep.mubr.f32.mxu0 0.0
    %895 = vmatmul.mubr.f32.gmra.mxu0 %v826
    %v896 = vpop.f32.mrf.mxu0
    %v897 = vadd.f32 0.0, %v896
    %v898 = vpop.f32.mrf.mxu0
    %899 = vdwg.mxu0
    %v900 = vmul.f32 %v897, 0.35355338
    %v901 = vadd.f32 %v900, %v135
    %v902 = vsel %vm139, %v901, -inf
    %903 = vmax.xlane.f32.xlu0 %v902
    %v904 = vpop.xlane.xlu0 %903
    %v905 = vsub.f32 %v901, %v904
    %v906 = vmul.f32 %v905, 1.442695
    %v907 = vpow.pop %v906
    %v908 = vsel %vm139, %v907, 0.0
    %909 = vadd.xlane.f32.xlu0 %v908
    %v910 = vpop.xlane.xlu0 %909
    %v911 = vrcp.pop %v910
    %v912 = vmul.f32 %v907, %v911
    %913 = vrot.lane.b32.xlu0 %v127, 64
    %v914 = vpop.permute.xlu0 %913
    %v917 = vsel %vm139, %v912, 0
    %919 = vmatprep.subr.mxu0 0.0
    %920 = vmatpush1.msra.mxu0 0.0
    %921 = vmatprep.subr.mxu0 0.0
    %922 = vmatpush1.msra.mxu0 0.0
    %923 = vmatprep.subr.mxu0 0.0
    %924 = vmatpush1.msra.mxu0 0.0
    %925 = vmatprep.subr.mxu0 0.0
    %926 = vmatpush1.msra.mxu0 0.0
    %927 = vmatprep.subr.mxu0 0.0
    %928 = vmatpush1.msra.mxu0 0.0
    %929 = vmatprep.subr.mxu0 0.0
    %930 = vmatpush1.msra.mxu0 0.0
    %931 = vmatprep.subr.mxu0 0.0
    %932 = vmatpush1.msra.mxu0 0.0
    %933 = vmatprep.subr.mxu0 0.0
    %934 = vmatpush1.msra.mxu0 0.0
    %935 = vmatprep.subr.mxu0 0.0
    %936 = vmatpush1.msra.mxu0 0.0
    %937 = vmatprep.subr.mxu0 0.0
    %938 = vmatpush1.msra.mxu0 0.0
    %939 = vmatprep.subr.mxu0 0.0
    %940 = vmatpush1.msra.mxu0 0.0
    %941 = vmatprep.subr.mxu0 0.0
    %942 = vmatpush1.msra.mxu0 0.0
    %943 = vmatprep.subr.mxu0 0.0
    %944 = vmatpush1.msra.mxu0 0.0
    %945 = vmatprep.subr.mxu0 0.0
    %946 = vmatpush1.msra.mxu0 0.0
    %947 = vmatprep.subr.mxu0 0.0
    %948 = vmatpush1.msra.mxu0 0.0
    %949 = vmatprep.subr.mxu0 0.0
    %950 = vmatpush1.msra.mxu0 %v914
    %951 = vmatprep.subr.mxu0 0.0
    %952 = vmatpush2.msra.mxu0 0.0
    %953 = vmatprep.subr.mxu0 0.0
    %954 = vmatpush2.msra.mxu0 0.0
    %955 = vmatprep.subr.mxu0 0.0
    %956 = vmatpush2.msra.mxu0 0.0
    %957 = vmatprep.subr.mxu0 0.0
    %958 = vmatpush2.msra.mxu0 0.0
    %959 = vmatprep.subr.mxu0 0.0
    %960 = vmatpush2.msra.mxu0 0.0
    %961 = vmatprep.subr.mxu0 0.0
    %962 = vmatpush2.msra.mxu0 0.0
    %963 = vmatprep.subr.mxu0 0.0
    %964 = vmatpush2.msra.mxu0 0.0
    %965 = vmatprep.subr.mxu0 0.0
    %966 = vmatpush2.msra.mxu0 0.0
    %967 = vmatprep.subr.mxu0 0.0
    %968 = vmatpush2.msra.mxu0 0.0
    %969 = vmatprep.subr.mxu0 0.0
    %970 = vmatpush2.msra.mxu0 0.0
    %971 = vmatprep.subr.mxu0 0.0
    %972 = vmatpush2.msra.mxu0 0.0
    %973 = vmatprep.subr.mxu0 0.0
    %974 = vmatpush2.msra.mxu0 0.0
    %975 = vmatprep.subr.mxu0 0.0
    %976 = vmatpush2.msra.mxu0 0.0
    %977 = vmatprep.subr.mxu0 0.0
    %978 = vmatpush2.msra.mxu0 0.0
    %979 = vmatprep.subr.mxu0 0.0
    %980 = vmatpush2.msra.mxu0 0.0
    %981 = vmatprep.subr.mxu0 0.0
    %982 = vmatpush2.msra.mxu0 0.0
    %983 = vmatprep.mubr.f32.mxu0 0.0
    %984 = vmatmul.mubr.f32.gmra.mxu0 %v917
    %v985 = vpop.f32.mrf.mxu0
    %v986 = vadd.f32 0.0, %v985
    %v987 = vpop.f32.mrf.mxu0
    %988 = vdwg.mxu0
    %989 = vst.msk [vmem:[#allocation2 + $0x8] sm:$0xff] %vm139, %v986
    %990 = vrot.lane.b32.xlu0 %v127, 120
    %v991 = vpop.permute.xlu0 %990
    %992 = vrot.lane.b32.xlu0 %v127, 88
    %v993 = vpop.permute.xlu0 %992
    %v994 = vsel %vm139, %v991, 0
    %v996 = vsel %vm139, %v993, 0
    %998 = vmatprep.subr.mxu0 0.0
    %999 = vmatpush1.xpose.msra.mxu0 0.0
    %1000 = vmatprep.subr.mxu0 0.0
    %1001 = vmatpush1.xpose.msra.mxu0 0.0
    %1002 = vmatprep.subr.mxu0 0.0
    %1003 = vmatpush1.xpose.msra.mxu0 0.0
    %1004 = vmatprep.subr.mxu0 0.0
    %1005 = vmatpush1.xpose.msra.mxu0 0.0
    %1006 = vmatprep.subr.mxu0 0.0
    %1007 = vmatpush1.xpose.msra.mxu0 0.0
    %1008 = vmatprep.subr.mxu0 0.0
    %1009 = vmatpush1.xpose.msra.mxu0 0.0
    %1010 = vmatprep.subr.mxu0 0.0
    %1011 = vmatpush1.xpose.msra.mxu0 0.0
    %1012 = vmatprep.subr.mxu0 0.0
    %1013 = vmatpush1.xpose.msra.mxu0 0.0
    %1014 = vmatprep.subr.mxu0 0.0
    %1015 = vmatpush1.xpose.msra.mxu0 0.0
    %1016 = vmatprep.subr.mxu0 0.0
    %1017 = vmatpush1.xpose.msra.mxu0 0.0
    %1018 = vmatprep.subr.mxu0 0.0
    %1019 = vmatpush1.xpose.msra.mxu0 0.0
    %1020 = vmatprep.subr.mxu0 0.0
    %1021 = vmatpush1.xpose.msra.mxu0 0.0
    %1022 = vmatprep.subr.mxu0 0.0
    %1023 = vmatpush1.xpose.msra.mxu0 0.0
    %1024 = vmatprep.subr.mxu0 0.0
    %1025 = vmatpush1.xpose.msra.mxu0 0.0
    %1026 = vmatprep.subr.mxu0 0.0
    %1027 = vmatpush1.xpose.msra.mxu0 0.0
    %1028 = vmatprep.subr.mxu0 0.0
    %1029 = vmatpush1.xpose.msra.mxu0 %v996
    %1030 = vmatprep.subr.mxu0 0.0
    %1031 = vmatpush2.xpose.msra.mxu0 0.0
    %1032 = vmatprep.subr.mxu0 0.0
    %1033 = vmatpush2.xpose.msra.mxu0 0.0
    %1034 = vmatprep.subr.mxu0 0.0
    %1035 = vmatpush2.xpose.msra.mxu0 0.0
    %1036 = vmatprep.subr.mxu0 0.0
    %1037 = vmatpush2.xpose.msra.mxu0 0.0
    %1038 = vmatprep.subr.mxu0 0.0
    %1039 = vmatpush2.xpose.msra.mxu0 0.0
    %1040 = vmatprep.subr.mxu0 0.0
    %1041 = vmatpush2.xpose.msra.mxu0 0.0
    %1042 = vmatprep.subr.mxu0 0.0
    %1043 = vmatpush2.xpose.msra.mxu0 0.0
    %1044 = vmatprep.subr.mxu0 0.0
    %1045 = vmatpush2.xpose.msra.mxu0 0.0
    %1046 = vmatprep.subr.mxu0 0.0
    %1047 = vmatpush2.xpose.msra.mxu0 0.0
    %1048 = vmatprep.subr.mxu0 0.0
    %1049 = vmatpush2.xpose.msra.mxu0 0.0
    %1050 = vmatprep.subr.mxu0 0.0
    %1051 = vmatpush2.xpose.msra.mxu0 0.0
    %1052 = vmatprep.subr.mxu0 0.0
    %1053 = vmatpush2.xpose.msra.mxu0 0.0
    %1054 = vmatprep.subr.mxu0 0.0
    %1055 = vmatpush2.xpose.msra.mxu0 0.0
    %1056 = vmatprep.subr.mxu0 0.0
    %1057 = vmatpush2.xpose.msra.mxu0 0.0
    %1058 = vmatprep.subr.mxu0 0.0
    %1059 = vmatpush2.xpose.msra.mxu0 0.0
    %1060 = vmatprep.subr.mxu0 0.0
    %1061 = vmatpush2.xpose.msra.mxu0 0.0
    %1062 = vmatprep.mubr.f32.mxu0 0.0
    %1063 = vmatmul.mubr.f32.gmra.mxu0 %v994
    %v1064 = vpop.f32.mrf.mxu0
    %v1065 = vadd.f32 0.0, %v1064
    %v1066 = vpop.f32.mrf.mxu0
    %1067 = vdwg.mxu0
    %v1068 = vmul.f32 %v1065, 0.35355338
    %v1069 = vadd.f32 %v1068, %v135
    %v1070 = vsel %vm139, %v1069, -inf
    %1071 = vmax.xlane.f32.xlu0 %v1070
    %v1072 = vpop.xlane.xlu0 %1071
    %v1073 = vsub.f32 %v1069, %v1072
    %v1074 = vmul.f32 %v1073, 1.442695
    %v1075 = vpow.pop %v1074
    %v1076 = vsel %vm139, %v1075, 0.0
    %1077 = vadd.xlane.f32.xlu0 %v1076
    %v1078 = vpop.xlane.xlu0 %1077
    %v1079 = vrcp.pop %v1078
    %v1080 = vmul.f32 %v1075, %v1079
    %1081 = vrot.lane.b32.xlu0 %v127, 56
    %v1082 = vpop.permute.xlu0 %1081
    %v1085 = vsel %vm139, %v1080, 0
    %1087 = vmatprep.subr.mxu0 0.0
    %1088 = vmatpush1.msra.mxu0 0.0
    %1089 = vmatprep.subr.mxu0 0.0
    %1090 = vmatpush1.msra.mxu0 0.0
    %1091 = vmatprep.subr.mxu0 0.0
    %1092 = vmatpush1.msra.mxu0 0.0
    %1093 = vmatprep.subr.mxu0 0.0
    %1094 = vmatpush1.msra.mxu0 0.0
    %1095 = vmatprep.subr.mxu0 0.0
    %1096 = vmatpush1.msra.mxu0 0.0
    %1097 = vmatprep.subr.mxu0 0.0
    %1098 = vmatpush1.msra.mxu0 0.0
    %1099 = vmatprep.subr.mxu0 0.0
    %1100 = vmatpush1.msra.mxu0 0.0
    %1101 = vmatprep.subr.mxu0 0.0
    %1102 = vmatpush1.msra.mxu0 0.0
    %1103 = vmatprep.subr.mxu0 0.0
    %1104 = vmatpush1.msra.mxu0 0.0
    %1105 = vmatprep.subr.mxu0 0.0
    %1106 = vmatpush1.msra.mxu0 0.0
    %1107 = vmatprep.subr.mxu0 0.0
    %1108 = vmatpush1.msra.mxu0 0.0
    %1109 = vmatprep.subr.mxu0 0.0
    %1110 = vmatpush1.msra.mxu0 0.0
    %1111 = vmatprep.subr.mxu0 0.0
    %1112 = vmatpush1.msra.mxu0 0.0
    %1113 = vmatprep.subr.mxu0 0.0
    %1114 = vmatpush1.msra.mxu0 0.0
    %1115 = vmatprep.subr.mxu0 0.0
    %1116 = vmatpush1.msra.mxu0 0.0
    %1117 = vmatprep.subr.mxu0 0.0
    %1118 = vmatpush1.msra.mxu0 %v1082
    %1119 = vmatprep.subr.mxu0 0.0
    %1120 = vmatpush2.msra.mxu0 0.0
    %1121 = vmatprep.subr.mxu0 0.0
    %1122 = vmatpush2.msra.mxu0 0.0
    %1123 = vmatprep.subr.mxu0 0.0
    %1124 = vmatpush2.msra.mxu0 0.0
    %1125 = vmatprep.subr.mxu0 0.0
    %1126 = vmatpush2.msra.mxu0 0.0
    %1127 = vmatprep.subr.mxu0 0.0
    %1128 = vmatpush2.msra.mxu0 0.0
    %1129 = vmatprep.subr.mxu0 0.0
    %1130 = vmatpush2.msra.mxu0 0.0
    %1131 = vmatprep.subr.mxu0 0.0
    %1132 = vmatpush2.msra.mxu0 0.0
    %1133 = vmatprep.subr.mxu0 0.0
    %1134 = vmatpush2.msra.mxu0 0.0
    %1135 = vmatprep.subr.mxu0 0.0
    %1136 = vmatpush2.msra.mxu0 0.0
    %1137 = vmatprep.subr.mxu0 0.0
    %1138 = vmatpush2.msra.mxu0 0.0
    %1139 = vmatprep.subr.mxu0 0.0
    %1140 = vmatpush2.msra.mxu0 0.0
    %1141 = vmatprep.subr.mxu0 0.0
    %1142 = vmatpush2.msra.mxu0 0.0
    %1143 = vmatprep.subr.mxu0 0.0
    %1144 = vmatpush2.msra.mxu0 0.0
    %1145 = vmatprep.subr.mxu0 0.0
    %1146 = vmatpush2.msra.mxu0 0.0
    %1147 = vmatprep.subr.mxu0 0.0
    %1148 = vmatpush2.msra.mxu0 0.0
    %1149 = vmatprep.subr.mxu0 0.0
    %1150 = vmatpush2.msra.mxu0 0.0
    %1151 = vmatprep.mubr.f32.mxu0 0.0
    %1152 = vmatmul.mubr.f32.gmra.mxu0 %v1085
    %v1153 = vpop.f32.mrf.mxu0
    %v1154 = vadd.f32 0.0, %v1153
    %v1155 = vpop.f32.mrf.mxu0
    %1156 = vdwg.mxu0
    %1158 = vrot.lane.b32.xlu0 %v1154, 8
    %v1159 = vpop.permute.xlu0 %1158
    %1161 = vst.msk [vmem:[#allocation2 + $0x8] sm:$0xff] %vm475, %v1159
    %1162 = vrot.lane.b32.xlu0 %v127, 112
    %v1163 = vpop.permute.xlu0 %1162
    %1164 = vrot.lane.b32.xlu0 %v127, 80
    %v1165 = vpop.permute.xlu0 %1164
    %v1166 = vsel %vm139, %v1163, 0
    %v1168 = vsel %vm139, %v1165, 0
    %1170 = vmatprep.subr.mxu0 0.0
    %1171 = vmatpush1.xpose.msra.mxu0 0.0
    %1172 = vmatprep.subr.mxu0 0.0
    %1173 = vmatpush1.xpose.msra.mxu0 0.0
    %1174 = vmatprep.subr.mxu0 0.0
    %1175 = vmatpush1.xpose.msra.mxu0 0.0
    %1176 = vmatprep.subr.mxu0 0.0
    %1177 = vmatpush1.xpose.msra.mxu0 0.0
    %1178 = vmatprep.subr.mxu0 0.0
    %1179 = vmatpush1.xpose.msra.mxu0 0.0
    %1180 = vmatprep.subr.mxu0 0.0
    %1181 = vmatpush1.xpose.msra.mxu0 0.0
    %1182 = vmatprep.subr.mxu0 0.0
    %1183 = vmatpush1.xpose.msra.mxu0 0.0
    %1184 = vmatprep.subr.mxu0 0.0
    %1185 = vmatpush1.xpose.msra.mxu0 0.0
    %1186 = vmatprep.subr.mxu0 0.0
    %1187 = vmatpush1.xpose.msra.mxu0 0.0
    %1188 = vmatprep.subr.mxu0 0.0
    %1189 = vmatpush1.xpose.msra.mxu0 0.0
    %1190 = vmatprep.subr.mxu0 0.0
    %1191 = vmatpush1.xpose.msra.mxu0 0.0
    %1192 = vmatprep.subr.mxu0 0.0
    %1193 = vmatpush1.xpose.msra.mxu0 0.0
    %1194 = vmatprep.subr.mxu0 0.0
    %1195 = vmatpush1.xpose.msra.mxu0 0.0
    %1196 = vmatprep.subr.mxu0 0.0
    %1197 = vmatpush1.xpose.msra.mxu0 0.0
    %1198 = vmatprep.subr.mxu0 0.0
    %1199 = vmatpush1.xpose.msra.mxu0 0.0
    %1200 = vmatprep.subr.mxu0 0.0
    %1201 = vmatpush1.xpose.msra.mxu0 %v1168
    %1202 = vmatprep.subr.mxu0 0.0
    %1203 = vmatpush2.xpose.msra.mxu0 0.0
    %1204 = vmatprep.subr.mxu0 0.0
    %1205 = vmatpush2.xpose.msra.mxu0 0.0
    %1206 = vmatprep.subr.mxu0 0.0
    %1207 = vmatpush2.xpose.msra.mxu0 0.0
    %1208 = vmatprep.subr.mxu0 0.0
    %1209 = vmatpush2.xpose.msra.mxu0 0.0
    %1210 = vmatprep.subr.mxu0 0.0
    %1211 = vmatpush2.xpose.msra.mxu0 0.0
    %1212 = vmatprep.subr.mxu0 0.0
    %1213 = vmatpush2.xpose.msra.mxu0 0.0
    %1214 = vmatprep.subr.mxu0 0.0
    %1215 = vmatpush2.xpose.msra.mxu0 0.0
    %1216 = vmatprep.subr.mxu0 0.0
    %1217 = vmatpush2.xpose.msra.mxu0 0.0
    %1218 = vmatprep.subr.mxu0 0.0
    %1219 = vmatpush2.xpose.msra.mxu0 0.0
    %1220 = vmatprep.subr.mxu0 0.0
    %1221 = vmatpush2.xpose.msra.mxu0 0.0
    %1222 = vmatprep.subr.mxu0 0.0
    %1223 = vmatpush2.xpose.msra.mxu0 0.0
    %1224 = vmatprep.subr.mxu0 0.0
    %1225 = vmatpush2.xpose.msra.mxu0 0.0
    %1226 = vmatprep.subr.mxu0 0.0
    %1227 = vmatpush2.xpose.msra.mxu0 0.0
    %1228 = vmatprep.subr.mxu0 0.0
    %1229 = vmatpush2.xpose.msra.mxu0 0.0
    %1230 = vmatprep.subr.mxu0 0.0
    %1231 = vmatpush2.xpose.msra.mxu0 0.0
    %1232 = vmatprep.subr.mxu0 0.0
    %1233 = vmatpush2.xpose.msra.mxu0 0.0
    %1234 = vmatprep.mubr.f32.mxu0 0.0
    %1235 = vmatmul.mubr.f32.gmra.mxu0 %v1166
    %v1236 = vpop.f32.mrf.mxu0
    %v1237 = vadd.f32 0.0, %v1236
    %v1238 = vpop.f32.mrf.mxu0
    %1239 = vdwg.mxu0
    %v1240 = vmul.f32 %v1237, 0.35355338
    %v1241 = vadd.f32 %v1240, %v135
    %v1242 = vsel %vm139, %v1241, -inf
    %1243 = vmax.xlane.f32.xlu0 %v1242
    %v1244 = vpop.xlane.xlu0 %1243
    %v1245 = vsub.f32 %v1241, %v1244
    %v1246 = vmul.f32 %v1245, 1.442695
    %v1247 = vpow.pop %v1246
    %v1248 = vsel %vm139, %v1247, 0.0
    %1249 = vadd.xlane.f32.xlu0 %v1248
    %v1250 = vpop.xlane.xlu0 %1249
    %v1251 = vrcp.pop %v1250
    %v1252 = vmul.f32 %v1247, %v1251
    %1253 = vrot.lane.b32.xlu0 %v127, 48
    %v1254 = vpop.permute.xlu0 %1253
    %v1257 = vsel %vm139, %v1252, 0
    %1259 = vmatprep.subr.mxu0 0.0
    %1260 = vmatpush1.msra.mxu0 0.0
    %1261 = vmatprep.subr.mxu0 0.0
    %1262 = vmatpush1.msra.mxu0 0.0
    %1263 = vmatprep.subr.mxu0 0.0
    %1264 = vmatpush1.msra.mxu0 0.0
    %1265 = vmatprep.subr.mxu0 0.0
    %1266 = vmatpush1.msra.mxu0 0.0
    %1267 = vmatprep.subr.mxu0 0.0
    %1268 = vmatpush1.msra.mxu0 0.0
    %1269 = vmatprep.subr.mxu0 0.0
    %1270 = vmatpush1.msra.mxu0 0.0
    %1271 = vmatprep.subr.mxu0 0.0
    %1272 = vmatpush1.msra.mxu0 0.0
    %1273 = vmatprep.subr.mxu0 0.0
    %1274 = vmatpush1.msra.mxu0 0.0
    %1275 = vmatprep.subr.mxu0 0.0
    %1276 = vmatpush1.msra.mxu0 0.0
    %1277 = vmatprep.subr.mxu0 0.0
    %1278 = vmatpush1.msra.mxu0 0.0
    %1279 = vmatprep.subr.mxu0 0.0
    %1280 = vmatpush1.msra.mxu0 0.0
    %1281 = vmatprep.subr.mxu0 0.0
    %1282 = vmatpush1.msra.mxu0 0.0
    %1283 = vmatprep.subr.mxu0 0.0
    %1284 = vmatpush1.msra.mxu0 0.0
    %1285 = vmatprep.subr.mxu0 0.0
    %1286 = vmatpush1.msra.mxu0 0.0
    %1287 = vmatprep.subr.mxu0 0.0
    %1288 = vmatpush1.msra.mxu0 0.0
    %1289 = vmatprep.subr.mxu0 0.0
    %1290 = vmatpush1.msra.mxu0 %v1254
    %1291 = vmatprep.subr.mxu0 0.0
    %1292 = vmatpush2.msra.mxu0 0.0
    %1293 = vmatprep.subr.mxu0 0.0
    %1294 = vmatpush2.msra.mxu0 0.0
    %1295 = vmatprep.subr.mxu0 0.0
    %1296 = vmatpush2.msra.mxu0 0.0
    %1297 = vmatprep.subr.mxu0 0.0
    %1298 = vmatpush2.msra.mxu0 0.0
    %1299 = vmatprep.subr.mxu0 0.0
    %1300 = vmatpush2.msra.mxu0 0.0
    %1301 = vmatprep.subr.mxu0 0.0
    %1302 = vmatpush2.msra.mxu0 0.0
    %1303 = vmatprep.subr.mxu0 0.0
    %1304 = vmatpush2.msra.mxu0 0.0
    %1305 = vmatprep.subr.mxu0 0.0
    %1306 = vmatpush2.msra.mxu0 0.0
    %1307 = vmatprep.subr.mxu0 0.0
    %1308 = vmatpush2.msra.mxu0 0.0
    %1309 = vmatprep.subr.mxu0 0.0
    %1310 = vmatpush2.msra.mxu0 0.0
    %1311 = vmatprep.subr.mxu0 0.0
    %1312 = vmatpush2.msra.mxu0 0.0
    %1313 = vmatprep.subr.mxu0 0.0
    %1314 = vmatpush2.msra.mxu0 0.0
    %1315 = vmatprep.subr.mxu0 0.0
    %1316 = vmatpush2.msra.mxu0 0.0
    %1317 = vmatprep.subr.mxu0 0.0
    %1318 = vmatpush2.msra.mxu0 0.0
    %1319 = vmatprep.subr.mxu0 0.0
    %1320 = vmatpush2.msra.mxu0 0.0
    %1321 = vmatprep.subr.mxu0 0.0
    %1322 = vmatpush2.msra.mxu0 0.0
    %1323 = vmatprep.mubr.f32.mxu0 0.0
    %1324 = vmatmul.mubr.f32.gmra.mxu0 %v1257
    %v1325 = vpop.f32.mrf.mxu0
    %v1326 = vadd.f32 0.0, %v1325
    %v1327 = vpop.f32.mrf.mxu0
    %1328 = vdwg.mxu0
    %1330 = vrot.lane.b32.xlu0 %v1326, 16
    %v1331 = vpop.permute.xlu0 %1330
    %1333 = vst.msk [vmem:[#allocation2 + $0x8] sm:$0xff] %vm648, %v1331
    %1334 = vrot.lane.b32.xlu0 %v127, 104
    %v1335 = vpop.permute.xlu0 %1334
    %1336 = vrot.lane.b32.xlu0 %v127, 72
    %v1337 = vpop.permute.xlu0 %1336
    %v1338 = vsel %vm139, %v1335, 0
    %v1340 = vsel %vm139, %v1337, 0
    %1342 = vmatprep.subr.mxu0 0.0
    %1343 = vmatpush1.xpose.msra.mxu0 0.0
    %1344 = vmatprep.subr.mxu0 0.0
    %1345 = vmatpush1.xpose.msra.mxu0 0.0
    %1346 = vmatprep.subr.mxu0 0.0
    %1347 = vmatpush1.xpose.msra.mxu0 0.0
    %1348 = vmatprep.subr.mxu0 0.0
    %1349 = vmatpush1.xpose.msra.mxu0 0.0
    %1350 = vmatprep.subr.mxu0 0.0
    %1351 = vmatpush1.xpose.msra.mxu0 0.0
    %1352 = vmatprep.subr.mxu0 0.0
    %1353 = vmatpush1.xpose.msra.mxu0 0.0
    %1354 = vmatprep.subr.mxu0 0.0
    %1355 = vmatpush1.xpose.msra.mxu0 0.0
    %1356 = vmatprep.subr.mxu0 0.0
    %1357 = vmatpush1.xpose.msra.mxu0 0.0
    %1358 = vmatprep.subr.mxu0 0.0
    %1359 = vmatpush1.xpose.msra.mxu0 0.0
    %1360 = vmatprep.subr.mxu0 0.0
    %1361 = vmatpush1.xpose.msra.mxu0 0.0
    %1362 = vmatprep.subr.mxu0 0.0
    %1363 = vmatpush1.xpose.msra.mxu0 0.0
    %1364 = vmatprep.subr.mxu0 0.0
    %1365 = vmatpush1.xpose.msra.mxu0 0.0
    %1366 = vmatprep.subr.mxu0 0.0
    %1367 = vmatpush1.xpose.msra.mxu0 0.0
    %1368 = vmatprep.subr.mxu0 0.0
    %1369 = vmatpush1.xpose.msra.mxu0 0.0
    %1370 = vmatprep.subr.mxu0 0.0
    %1371 = vmatpush1.xpose.msra.mxu0 0.0
    %1372 = vmatprep.subr.mxu0 0.0
    %1373 = vmatpush1.xpose.msra.mxu0 %v1340
    %1374 = vmatprep.subr.mxu0 0.0
    %1375 = vmatpush2.xpose.msra.mxu0 0.0
    %1376 = vmatprep.subr.mxu0 0.0
    %1377 = vmatpush2.xpose.msra.mxu0 0.0
    %1378 = vmatprep.subr.mxu0 0.0
    %1379 = vmatpush2.xpose.msra.mxu0 0.0
    %1380 = vmatprep.subr.mxu0 0.0
    %1381 = vmatpush2.xpose.msra.mxu0 0.0
    %1382 = vmatprep.subr.mxu0 0.0
    %1383 = vmatpush2.xpose.msra.mxu0 0.0
    %1384 = vmatprep.subr.mxu0 0.0
    %1385 = vmatpush2.xpose.msra.mxu0 0.0
    %1386 = vmatprep.subr.mxu0 0.0
    %1387 = vmatpush2.xpose.msra.mxu0 0.0
    %1388 = vmatprep.subr.mxu0 0.0
    %1389 = vmatpush2.xpose.msra.mxu0 0.0
    %1390 = vmatprep.subr.mxu0 0.0
    %1391 = vmatpush2.xpose.msra.mxu0 0.0
    %1392 = vmatprep.subr.mxu0 0.0
    %1393 = vmatpush2.xpose.msra.mxu0 0.0
    %1394 = vmatprep.subr.mxu0 0.0
    %1395 = vmatpush2.xpose.msra.mxu0 0.0
    %1396 = vmatprep.subr.mxu0 0.0
    %1397 = vmatpush2.xpose.msra.mxu0 0.0
    %1398 = vmatprep.subr.mxu0 0.0
    %1399 = vmatpush2.xpose.msra.mxu0 0.0
    %1400 = vmatprep.subr.mxu0 0.0
    %1401 = vmatpush2.xpose.msra.mxu0 0.0
    %1402 = vmatprep.subr.mxu0 0.0
    %1403 = vmatpush2.xpose.msra.mxu0 0.0
    %1404 = vmatprep.subr.mxu0 0.0
    %1405 = vmatpush2.xpose.msra.mxu0 0.0
    %1406 = vmatprep.mubr.f32.mxu0 0.0
    %1407 = vmatmul.mubr.f32.gmra.mxu0 %v1338
    %v1408 = vpop.f32.mrf.mxu0
    %v1409 = vadd.f32 0.0, %v1408
    %v1410 = vpop.f32.mrf.mxu0
    %1411 = vdwg.mxu0
    %v1412 = vmul.f32 %v1409, 0.35355338
    %v1413 = vadd.f32 %v1412, %v135
    %v1414 = vsel %vm139, %v1413, -inf
    %1415 = vmax.xlane.f32.xlu0 %v1414
    %v1416 = vpop.xlane.xlu0 %1415
    %v1417 = vsub.f32 %v1413, %v1416
    %v1418 = vmul.f32 %v1417, 1.442695
    %v1419 = vpow.pop %v1418
    %v1420 = vsel %vm139, %v1419, 0.0
    %1421 = vadd.xlane.f32.xlu0 %v1420
    %v1422 = vpop.xlane.xlu0 %1421
    %v1423 = vrcp.pop %v1422
    %v1424 = vmul.f32 %v1419, %v1423
    %1425 = vrot.lane.b32.xlu0 %v127, 40
    %v1426 = vpop.permute.xlu0 %1425
    %v1429 = vsel %vm139, %v1424, 0
    %1431 = vmatprep.subr.mxu0 0.0
    %1432 = vmatpush1.msra.mxu0 0.0
    %1433 = vmatprep.subr.mxu0 0.0
    %1434 = vmatpush1.msra.mxu0 0.0
    %1435 = vmatprep.subr.mxu0 0.0
    %1436 = vmatpush1.msra.mxu0 0.0
    %1437 = vmatprep.subr.mxu0 0.0
    %1438 = vmatpush1.msra.mxu0 0.0
    %1439 = vmatprep.subr.mxu0 0.0
    %1440 = vmatpush1.msra.mxu0 0.0
    %1441 = vmatprep.subr.mxu0 0.0
    %1442 = vmatpush1.msra.mxu0 0.0
    %1443 = vmatprep.subr.mxu0 0.0
    %1444 = vmatpush1.msra.mxu0 0.0
    %1445 = vmatprep.subr.mxu0 0.0
    %1446 = vmatpush1.msra.mxu0 0.0
    %1447 = vmatprep.subr.mxu0 0.0
    %1448 = vmatpush1.msra.mxu0 0.0
    %1449 = vmatprep.subr.mxu0 0.0
    %1450 = vmatpush1.msra.mxu0 0.0
    %1451 = vmatprep.subr.mxu0 0.0
    %1452 = vmatpush1.msra.mxu0 0.0
    %1453 = vmatprep.subr.mxu0 0.0
    %1454 = vmatpush1.msra.mxu0 0.0
    %1455 = vmatprep.subr.mxu0 0.0
    %1456 = vmatpush1.msra.mxu0 0.0
    %1457 = vmatprep.subr.mxu0 0.0
    %1458 = vmatpush1.msra.mxu0 0.0
    %1459 = vmatprep.subr.mxu0 0.0
    %1460 = vmatpush1.msra.mxu0 0.0
    %1461 = vmatprep.subr.mxu0 0.0
    %1462 = vmatpush1.msra.mxu0 %v1426
    %1463 = vmatprep.subr.mxu0 0.0
    %1464 = vmatpush2.msra.mxu0 0.0
    %1465 = vmatprep.subr.mxu0 0.0
    %1466 = vmatpush2.msra.mxu0 0.0
    %1467 = vmatprep.subr.mxu0 0.0
    %1468 = vmatpush2.msra.mxu0 0.0
    %1469 = vmatprep.subr.mxu0 0.0
    %1470 = vmatpush2.msra.mxu0 0.0
    %1471 = vmatprep.subr.mxu0 0.0
    %1472 = vmatpush2.msra.mxu0 0.0
    %1473 = vmatprep.subr.mxu0 0.0
    %1474 = vmatpush2.msra.mxu0 0.0
    %1475 = vmatprep.subr.mxu0 0.0
    %1476 = vmatpush2.msra.mxu0 0.0
    %1477 = vmatprep.subr.mxu0 0.0
    %1478 = vmatpush2.msra.mxu0 0.0
    %1479 = vmatprep.subr.mxu0 0.0
    %1480 = vmatpush2.msra.mxu0 0.0
    %1481 = vmatprep.subr.mxu0 0.0
    %1482 = vmatpush2.msra.mxu0 0.0
    %1483 = vmatprep.subr.mxu0 0.0
    %1484 = vmatpush2.msra.mxu0 0.0
    %1485 = vmatprep.subr.mxu0 0.0
    %1486 = vmatpush2.msra.mxu0 0.0
    %1487 = vmatprep.subr.mxu0 0.0
    %1488 = vmatpush2.msra.mxu0 0.0
    %1489 = vmatprep.subr.mxu0 0.0
    %1490 = vmatpush2.msra.mxu0 0.0
    %1491 = vmatprep.subr.mxu0 0.0
    %1492 = vmatpush2.msra.mxu0 0.0
    %1493 = vmatprep.subr.mxu0 0.0
    %1494 = vmatpush2.msra.mxu0 0.0
    %1495 = vmatprep.mubr.f32.mxu0 0.0
    %1496 = vmatmul.mubr.f32.gmra.mxu0 %v1429
    %v1497 = vpop.f32.mrf.mxu0
    %v1498 = vadd.f32 0.0, %v1497
    %v1499 = vpop.f32.mrf.mxu0
    %1500 = vdwg.mxu0
    %1502 = vrot.lane.b32.xlu0 %v1498, 24
    %v1503 = vpop.permute.xlu0 %1502
    %1505 = vst.msk [vmem:[#allocation2 + $0x8] sm:$0xff] %vm821, %v1503
    %v1506 = vld [vmem:[#allocation2] sm:$0xff]
    %v1507 = vld [vmem:[#allocation2 + $0x8] sm:$0xff]
    %v1508 = vld [vmem:[%s2] sm:$0xff]
    %v1509 = vld [vmem:[%s2 + $0x8] sm:$0xff]
    %v1510 = vld [vmem:[%s2 + $0x10] sm:$0xff]
    %v1511 = vld [vmem:[%s2 + $0x18] sm:$0xff]
    %v1512 = vld [vmem:[%s3] sm:$0x1]
    %v1514 = vlaneseq
    %v1515 = vshrl.u32 %v1514, 7
    %v1516 = vsub.s32 0, %v1515
    %v1517 = vrot.slane %v1512, %v1516
    %v1520 = vsel %vm48, %v1506, 0
    %v1523 = vsel %vm48, %v1507, 0
    %1525 = vmatprep.subr.mxu0 0.0
    %1526 = vmatpush1.msra.mxu0 0.0
    %1527 = vmatprep.subr.mxu0 0.0
    %1528 = vmatpush1.msra.mxu0 0.0
    %1529 = vmatprep.subr.mxu0 0.0
    %1530 = vmatpush1.msra.mxu0 0.0
    %1531 = vmatprep.subr.mxu0 0.0
    %1532 = vmatpush1.msra.mxu0 0.0
    %1533 = vmatprep.subr.mxu0 0.0
    %1534 = vmatpush1.msra.mxu0 0.0
    %1535 = vmatprep.subr.mxu0 0.0
    %1536 = vmatpush1.msra.mxu0 0.0
    %1537 = vmatprep.subr.mxu0 0.0
    %1538 = vmatpush1.msra.mxu0 0.0
    %1539 = vmatprep.subr.mxu0 0.0
    %1540 = vmatpush1.msra.mxu0 0.0
    %1541 = vmatprep.subr.mxu0 0.0
    %1542 = vmatpush1.msra.mxu0 0.0
    %1543 = vmatprep.subr.mxu0 0.0
    %1544 = vmatpush1.msra.mxu0 0.0
    %1545 = vmatprep.subr.mxu0 0.0
    %1546 = vmatpush1.msra.mxu0 0.0
    %1547 = vmatprep.subr.mxu0 0.0
    %1548 = vmatpush1.msra.mxu0 0.0
    %1549 = vmatprep.subr.mxu0 0.0
    %1550 = vmatpush1.msra.mxu0 %v1511
    %1551 = vmatprep.subr.mxu0 0.0
    %1552 = vmatpush1.msra.mxu0 %v1510
    %1553 = vmatprep.subr.mxu0 0.0
    %1554 = vmatpush1.msra.mxu0 %v1509
    %1555 = vmatprep.subr.mxu0 0.0
    %1556 = vmatpush1.msra.mxu0 %v1508
    %1557 = vmatprep.subr.mxu0 0.0
    %1558 = vmatpush2.msra.mxu0 0.0
    %1559 = vmatprep.subr.mxu0 0.0
    %1560 = vmatpush2.msra.mxu0 0.0
    %1561 = vmatprep.subr.mxu0 0.0
    %1562 = vmatpush2.msra.mxu0 0.0
    %1563 = vmatprep.subr.mxu0 0.0
    %1564 = vmatpush2.msra.mxu0 0.0
    %1565 = vmatprep.subr.mxu0 0.0
    %1566 = vmatpush2.msra.mxu0 0.0
    %1567 = vmatprep.subr.mxu0 0.0
    %1568 = vmatpush2.msra.mxu0 0.0
    %1569 = vmatprep.subr.mxu0 0.0
    %1570 = vmatpush2.msra.mxu0 0.0
    %1571 = vmatprep.subr.mxu0 0.0
    %1572 = vmatpush2.msra.mxu0 0.0
    %1573 = vmatprep.subr.mxu0 0.0
    %1574 = vmatpush2.msra.mxu0 0.0
    %1575 = vmatprep.subr.mxu0 0.0
    %1576 = vmatpush2.msra.mxu0 0.0
    %1577 = vmatprep.subr.mxu0 0.0
    %1578 = vmatpush2.msra.mxu0 0.0
    %1579 = vmatprep.subr.mxu0 0.0
    %1580 = vmatpush2.msra.mxu0 0.0
    %1581 = vmatprep.subr.mxu0 0.0
    %1582 = vmatpush2.msra.mxu0 0.0
    %1583 = vmatprep.subr.mxu0 0.0
    %1584 = vmatpush2.msra.mxu0 0.0
    %1585 = vmatprep.subr.mxu0 0.0
    %1586 = vmatpush2.msra.mxu0 0.0
    %1587 = vmatprep.subr.mxu0 0.0
    %1588 = vmatpush2.msra.mxu0 0.0
    %1589 = vmatprep.mubr.f32.mxu0 0.0
    %1590 = vmatmul.mubr.f32.gmra.mxu0 %v1520
    %v1591 = vpop.f32.mrf.mxu0
    %v1592 = vadd.f32 %v1517, %v1591
    %v1593 = vpop.f32.mrf.mxu0
    %1594 = vmatprep.mubr.f32.mxu0 0.0
    %1595 = vmatmul.mubr.f32.gmra.mxu0 %v1523
    %v1596 = vpop.f32.mrf.mxu0
    %v1597 = vadd.f32 %v1517, %v1596
    %v1598 = vpop.f32.mrf.mxu0
    %1599 = vdwg.mxu0
    %v1600 = vadd.f32 %v42, %v1592
    %v1601 = vadd.f32 %v43, %v1597
    %v1602 = vld [vmem:[%s4] sm:$0x1]
    %v1603 = vld [vmem:[%s5] sm:$0x1]
    %v1604 = vsel %vm48, %v1600, 0.0
    %1605 = vadd.xlane.f32.xlu0 %v1604
    %v1606 = vpop.xlane.xlu0 %1605
    %v1607 = vsel %vm48, %v1601, 0.0
    %1608 = vadd.xlane.f32.xlu0 %v1607
    %v1609 = vpop.xlane.xlu0 %1608
    %v1610 = vrcp.pop 32.0
    %v1611 = vmul.f32 %v1606, %v1610
    %v1612 = vmul.f32 %v1609, %v1610
    %v1613 = vsub.f32 %v1600, %v1611
    %v1614 = vsub.f32 %v1601, %v1612
    %v1615 = vmul.f32 %v1613, %v1613
    %v1616 = vmul.f32 %v1614, %v1614
    %v1617 = vsel %vm48, %v1615, 0.0
    %1618 = vadd.xlane.f32.xlu0 %v1617
    %v1619 = vpop.xlane.xlu0 %1618
    %v1620 = vsel %vm48, %v1616, 0.0
    %1621 = vadd.xlane.f32.xlu0 %v1620
    %v1622 = vpop.xlane.xlu0 %1621
    %v1623 = vmul.f32 %v1619, %v1610
    %v1624 = vmul.f32 %v1622, %v1610
    %v1625 = vadd.f32 %v1623, 1e-05
    %v1626 = vadd.f32 %v1624, 1e-05
    %v1627 = vrsqrt.pop %v1625
    %v1628 = vrsqrt.pop %v1626
    %v1629 = vmul.f32 %v1613, %v1627
    %v1630 = vmul.f32 %v1614, %v1628
    %v1632 = vlaneseq
    %v1633 = vshrl.u32 %v1632, 7
    %v1634 = vsub.s32 0, %v1633
    %v1635 = vrot.slane %v1602, %v1634
    %v1637 = vmul.f32 %v1629, %v1635
    %v1638 = vmul.f32 %v1630, %v1635
    %v1640 = vlaneseq
    %v1641 = vshrl.u32 %v1640, 7
    %v1642 = vsub.s32 0, %v1641
    %v1643 = vrot.slane %v1603, %v1642
    %v1645 = vadd.f32 %v1637, %v1643
    %v1646 = vadd.f32 %v1638, %v1643
    %v1647 = vld [vmem:[%s6] sm:$0xff]
    %v1648 = vld [vmem:[%s6 + $0x8] sm:$0xff]
    %v1649 = vld [vmem:[%s6 + $0x10] sm:$0xff]
    %v1650 = vld [vmem:[%s6 + $0x18] sm:$0xff]
    %v1651 = vld [vmem:[%s7] sm:$0x1]
    %v1653 = vlaneseq
    %v1654 = vshrl.u32 %v1653, 7
    %v1655 = vsub.s32 0, %v1654
    %v1656 = vrot.slane %v1651, %v1655
    %v1659 = vsel %vm48, %v1645, 0
    %v1662 = vsel %vm48, %v1646, 0
    %1664 = vmatprep.subr.mxu0 0.0
    %1665 = vmatpush1.msra.mxu0 0.0
    %1666 = vmatprep.subr.mxu0 0.0
    %1667 = vmatpush1.msra.mxu0 0.0
    %1668 = vmatprep.subr.mxu0 0.0
    %1669 = vmatpush1.msra.mxu0 0.0
    %1670 = vmatprep.subr.mxu0 0.0
    %1671 = vmatpush1.msra.mxu0 0.0
    %1672 = vmatprep.subr.mxu0 0.0
    %1673 = vmatpush1.msra.mxu0 0.0
    %1674 = vmatprep.subr.mxu0 0.0
    %1675 = vmatpush1.msra.mxu0 0.0
    %1676 = vmatprep.subr.mxu0 0.0
    %1677 = vmatpush1.msra.mxu0 0.0
    %1678 = vmatprep.subr.mxu0 0.0
    %1679 = vmatpush1.msra.mxu0 0.0
    %1680 = vmatprep.subr.mxu0 0.0
    %1681 = vmatpush1.msra.mxu0 0.0
    %1682 = vmatprep.subr.mxu0 0.0
    %1683 = vmatpush1.msra.mxu0 0.0
    %1684 = vmatprep.subr.mxu0 0.0
    %1685 = vmatpush1.msra.mxu0 0.0
    %1686 = vmatprep.subr.mxu0 0.0
    %1687 = vmatpush1.msra.mxu0 0.0
    %1688 = vmatprep.subr.mxu0 0.0
    %1689 = vmatpush1.msra.mxu0 %v1650
    %1690 = vmatprep.subr.mxu0 0.0
    %1691 = vmatpush1.msra.mxu0 %v1649
    %1692 = vmatprep.subr.mxu0 0.0
    %1693 = vmatpush1.msra.mxu0 %v1648
    %1694 = vmatprep.subr.mxu0 0.0
    %1695 = vmatpush1.msra.mxu0 %v1647
    %1696 = vmatprep.subr.mxu0 0.0
    %1697 = vmatpush2.msra.mxu0 0.0
    %1698 = vmatprep.subr.mxu0 0.0
    %1699 = vmatpush2.msra.mxu0 0.0
    %1700 = vmatprep.subr.mxu0 0.0
    %1701 = vmatpush2.msra.mxu0 0.0
    %1702 = vmatprep.subr.mxu0 0.0
    %1703 = vmatpush2.msra.mxu0 0.0
    %1704 = vmatprep.subr.mxu0 0.0
    %1705 = vmatpush2.msra.mxu0 0.0
    %1706 = vmatprep.subr.mxu0 0.0
    %1707 = vmatpush2.msra.mxu0 0.0
    %1708 = vmatprep.subr.mxu0 0.0
    %1709 = vmatpush2.msra.mxu0 0.0
    %1710 = vmatprep.subr.mxu0 0.0
    %1711 = vmatpush2.msra.mxu0 0.0
    %1712 = vmatprep.subr.mxu0 0.0
    %1713 = vmatpush2.msra.mxu0 0.0
    %1714 = vmatprep.subr.mxu0 0.0
    %1715 = vmatpush2.msra.mxu0 0.0
    %1716 = vmatprep.subr.mxu0 0.0
    %1717 = vmatpush2.msra.mxu0 0.0
    %1718 = vmatprep.subr.mxu0 0.0
    %1719 = vmatpush2.msra.mxu0 0.0
    %1720 = vmatprep.subr.mxu0 0.0
    %1721 = vmatpush2.msra.mxu0 0.0
    %1722 = vmatprep.subr.mxu0 0.0
    %1723 = vmatpush2.msra.mxu0 0.0
    %1724 = vmatprep.subr.mxu0 0.0
    %1725 = vmatpush2.msra.mxu0 0.0
    %1726 = vmatprep.subr.mxu0 0.0
    %1727 = vmatpush2.msra.mxu0 0.0
    %1728 = vmatprep.mubr.f32.mxu0 0.0
    %1729 = vmatmul.mubr.f32.gmra.mxu0 %v1659
    %v1730 = vpop.f32.mrf.mxu0
    %v1731 = vadd.f32 %v1656, %v1730
    %v1732 = vpop.f32.mrf.mxu0
    %1733 = vmatprep.mubr.f32.mxu0 0.0
    %1734 = vmatmul.mubr.f32.gmra.mxu0 %v1662
    %v1735 = vpop.f32.mrf.mxu0
    %v1736 = vadd.f32 %v1656, %v1735
    %v1737 = vpop.f32.mrf.mxu0
    %1738 = vdwg.mxu0
    %v1739 = vmax.f32 %v1731, 0.0
    %v1740 = vmax.f32 %v1736, 0.0
    %v1741 = vld [vmem:[%s8] sm:$0xff]
    %v1742 = vld [vmem:[%s8 + $0x8] sm:$0xff]
    %v1743 = vld [vmem:[%s8 + $0x10] sm:$0xff]
    %v1744 = vld [vmem:[%s8 + $0x18] sm:$0xff]
    %v1745 = vld [vmem:[%s8 + $0x20] sm:$0xff]
    %v1746 = vld [vmem:[%s8 + $0x28] sm:$0xff]
    %v1747 = vld [vmem:[%s8 + $0x30] sm:$0xff]
    %v1748 = vld [vmem:[%s8 + $0x38] sm:$0xff]
    %v1749 = vld [vmem:[%s8 + $0x40] sm:$0xff]
    %v1750 = vld [vmem:[%s8 + $0x48] sm:$0xff]
    %v1751 = vld [vmem:[%s8 + $0x50] sm:$0xff]
    %v1752 = vld [vmem:[%s8 + $0x58] sm:$0xff]
    %v1753 = vld [vmem:[%s8 + $0x60] sm:$0xff]
    %v1754 = vld [vmem:[%s8 + $0x68] sm:$0xff]
    %v1755 = vld [vmem:[%s8 + $0x70] sm:$0xff]
    %v1756 = vld [vmem:[%s8 + $0x78] sm:$0xff]
    %v1757 = vld [vmem:[%s9] sm:$0x1]
    %v1759 = vlaneseq
    %v1760 = vshrl.u32 %v1759, 7
    %v1761 = vsub.s32 0, %v1760
    %v1762 = vrot.slane %v1757, %v1761
    %1764 = vmatprep.subr.mxu0 0.0
    %1765 = vmatpush1.msra.mxu0 %v1756
    %1766 = vmatprep.subr.mxu0 0.0
    %1767 = vmatpush1.msra.mxu0 %v1755
    %1768 = vmatprep.subr.mxu0 0.0
    %1769 = vmatpush1.msra.mxu0 %v1754
    %1770 = vmatprep.subr.mxu0 0.0
    %1771 = vmatpush1.msra.mxu0 %v1753
    %1772 = vmatprep.subr.mxu0 0.0
    %1773 = vmatpush1.msra.mxu0 %v1752
    %1774 = vmatprep.subr.mxu0 0.0
    %1775 = vmatpush1.msra.mxu0 %v1751
    %1776 = vmatprep.subr.mxu0 0.0
    %1777 = vmatpush1.msra.mxu0 %v1750
    %1778 = vmatprep.subr.mxu0 0.0
    %1779 = vmatpush1.msra.mxu0 %v1749
    %1780 = vmatprep.subr.mxu0 0.0
    %1781 = vmatpush1.msra.mxu0 %v1748
    %1782 = vmatprep.subr.mxu0 0.0
    %1783 = vmatpush1.msra.mxu0 %v1747
    %1784 = vmatprep.subr.mxu0 0.0
    %1785 = vmatpush1.msra.mxu0 %v1746
    %1786 = vmatprep.subr.mxu0 0.0
    %1787 = vmatpush1.msra.mxu0 %v1745
    %1788 = vmatprep.subr.mxu0 0.0
    %1789 = vmatpush1.msra.mxu0 %v1744
    %1790 = vmatprep.subr.mxu0 0.0
    %1791 = vmatpush1.msra.mxu0 %v1743
    %1792 = vmatprep.subr.mxu0 0.0
    %1793 = vmatpush1.msra.mxu0 %v1742
    %1794 = vmatprep.subr.mxu0 0.0
    %1795 = vmatpush1.msra.mxu0 %v1741
    %1796 = vmatprep.subr.mxu0 0.0
    %1797 = vmatpush2.msra.mxu0 0.0
    %1798 = vmatprep.subr.mxu0 0.0
    %1799 = vmatpush2.msra.mxu0 0.0
    %1800 = vmatprep.subr.mxu0 0.0
    %1801 = vmatpush2.msra.mxu0 0.0
    %1802 = vmatprep.subr.mxu0 0.0
    %1803 = vmatpush2.msra.mxu0 0.0
    %1804 = vmatprep.subr.mxu0 0.0
    %1805 = vmatpush2.msra.mxu0 0.0
    %1806 = vmatprep.subr.mxu0 0.0
    %1807 = vmatpush2.msra.mxu0 0.0
    %1808 = vmatprep.subr.mxu0 0.0
    %1809 = vmatpush2.msra.mxu0 0.0
    %1810 = vmatprep.subr.mxu0 0.0
    %1811 = vmatpush2.msra.mxu0 0.0
    %1812 = vmatprep.subr.mxu0 0.0
    %1813 = vmatpush2.msra.mxu0 0.0
    %1814 = vmatprep.subr.mxu0 0.0
    %1815 = vmatpush2.msra.mxu0 0.0
    %1816 = vmatprep.subr.mxu0 0.0
    %1817 = vmatpush2.msra.mxu0 0.0
    %1818 = vmatprep.subr.mxu0 0.0
    %1819 = vmatpush2.msra.mxu0 0.0
    %1820 = vmatprep.subr.mxu0 0.0
    %1821 = vmatpush2.msra.mxu0 0.0
    %1822 = vmatprep.subr.mxu0 0.0
    %1823 = vmatpush2.msra.mxu0 0.0
    %1824 = vmatprep.subr.mxu0 0.0
    %1825 = vmatpush2.msra.mxu0 0.0
    %1826 = vmatprep.subr.mxu0 0.0
    %1827 = vmatpush2.msra.mxu0 0.0
    %1828 = vmatprep.mubr.f32.mxu0 0.0
    %1829 = vmatmul.mubr.f32.gmra.mxu0 %v1739
    %v1830 = vpop.f32.mrf.mxu0
    %v1831 = vadd.f32 %v1762, %v1830
    %v1832 = vpop.f32.mrf.mxu0
    %1833 = vmatprep.mubr.f32.mxu0 0.0
    %1834 = vmatmul.mubr.f32.gmra.mxu0 %v1740
    %v1835 = vpop.f32.mrf.mxu0
    %v1836 = vadd.f32 %v1762, %v1835
    %v1837 = vpop.f32.mrf.mxu0
    %1838 = vdwg.mxu0
    %v1839 = vadd.f32 %v1645, %v1831
    %v1840 = vadd.f32 %v1646, %v1836
    %v1841 = vld [vmem:[%s10] sm:$0x1]
    %v1842 = vld [vmem:[%s11] sm:$0x1]
    %v1843 = vsel %vm48, %v1839, 0.0
    %1844 = vadd.xlane.f32.xlu0 %v1843
    %v1845 = vpop.xlane.xlu0 %1844
    %v1846 = vsel %vm48, %v1840, 0.0
    %1847 = vadd.xlane.f32.xlu0 %v1846
    %v1848 = vpop.xlane.xlu0 %1847
    %v1849 = vmul.f32 %v1845, %v1610
    %v1850 = vmul.f32 %v1848, %v1610
    %v1851 = vsub.f32 %v1839, %v1849
    %v1852 = vsub.f32 %v1840, %v1850
    %v1853 = vmul.f32 %v1851, %v1851
    %v1854 = vmul.f32 %v1852, %v1852
    %v1855 = vsel %vm48, %v1853, 0.0
    %1856 = vadd.xlane.f32.xlu0 %v1855
    %v1857 = vpop.xlane.xlu0 %1856
    %v1858 = vsel %vm48, %v1854, 0.0
    %1859 = vadd.xlane.f32.xlu0 %v1858
    %v1860 = vpop.xlane.xlu0 %1859
    %v1861 = vmul.f32 %v1857, %v1610
    %v1862 = vmul.f32 %v1860, %v1610
    %v1863 = vadd.f32 %v1861, 1e-05
    %v1864 = vadd.f32 %v1862, 1e-05
    %v1865 = vrsqrt.pop %v1863
    %v1866 = vrsqrt.pop %v1864
    %v1867 = vmul.f32 %v1851, %v1865
    %v1868 = vmul.f32 %v1852, %v1866
    %v1870 = vlaneseq
    %v1871 = vshrl.u32 %v1870, 7
    %v1872 = vsub.s32 0, %v1871
    %v1873 = vrot.slane %v1841, %v1872
    %v1875 = vmul.f32 %v1867, %v1873
    %v1876 = vmul.f32 %v1868, %v1873
    %v1878 = vlaneseq
    %v1879 = vshrl.u32 %v1878, 7
    %v1880 = vsub.s32 0, %v1879
    %v1881 = vrot.slane %v1842, %v1880
    %v1883 = vadd.f32 %v1875, %v1881
    %v1884 = vadd.f32 %v1876, %v1881
    %1885 = vst.msk [vmem:[#allocation3] sm:$0xff] %vm48, %v1883
    %1886 = vst.msk [vmem:[#allocation3 + $0x8] sm:$0xff] %vm48, %v1884
    // Predicated region
    $region50: #{tpu_custom_call.1} parent=1 // pred_check
      _
    $region51: #{tpu_custom_call.1} parent=1 // pred_check_branch
      %1888 = sbr.rel (0) target = $region53
    $region52: #{tpu_custom_call.1} parent=1 // pred_region
      %s1890 = ssub.s32 256, 256
      %1891 = vsyncadd [#allocation4], %s1890
      %s1892 = sshll.u32 [#allocation3], 4
      %s1893 = int_to_ptr.vmem [resolvable:$true] %s1892
      %1898 = dma.vmem_to_hbm [thread:$0]  %s1893, 256, %s12, [#allocation4], 128, 128, 8
    $region53: #{tpu_custom_call.1} parent=1 // pred_fallthru
      _
    // Predicated region
    $region54: #{tpu_custom_call.1} parent=1 // pred_check
      _
    $region55: #{tpu_custom_call.1} parent=1 // pred_check_branch
      %1900 = sbr.rel (0) target = $region57
    $region56: #{tpu_custom_call.1} parent=1 // pred_region
      %1901 = dma.done [#allocation4], 256
    $region57: #{tpu_custom_call.1} parent=1 // pred_fallthru
      _
    %1902 = vsyncpa [#allocation4], 1

</llo_original>
